<compile_context>
chip_gen: v6e
topology: v6e:2x2x1
jax: 0.10.0
libtpu: 0.0.40
codegen_flags: <defaults>
</compile_context>

<pallas_src>
import functools

import jax
import jax.numpy as jnp
from jax.experimental import pallas as pl
from jax.experimental.pallas import tpu as pltpu


def _round_up(x, m):
    return ((x + m - 1) // m) * m


def _lane_pad(d):
    # <=128 -> one full vreg lane width; >128 -> 256-lane multiples so the
    # matmul N dim fills the 2x256^2 MXU on v6e/v7x (also fine on v5e).
    return 128 if d <= 128 else _round_up(d, 256)


def _pick_row_tile(H, W, Cin, Cp, budget_bytes=32 * 1024 * 1024):
    """Largest divisor of H whose per-step working set fits the VMEM budget."""
    lanes_k = max(9 * Cin, 128)

    def est(t):
        in_blk = 4 * (t + 2) * (W + 2) * max(Cin, 8) * 2   # bf16 input blocks, double-buffered
        lhs = t * W * lanes_k * 2                           # bf16 im2col tile
        feat = t * W * Cp * 4                               # f32 conv output tile
        return in_blk + lhs + feat

    for t in sorted((d for d in range(1, H + 1) if H % d == 0), reverse=True):
        if est(t) <= budget_bytes:
            return t
    return 1


def _classifier_kernel(x_ref, h0_ref, h1_ref, cw_ref, cb_ref, fw_ref, fb_ref,
                       out_ref, acc_ref, *, T_H, W, inv_hw):
    # x_ref:   (1, T_H, W+2, Cin) bf16   main row block of the padded NHWC image
    # h0/h1:   (1, 1,   W+2, Cin) bf16   the 2 halo rows below the main block
    # cw_ref:  (9*Cin, Cp)  bf16   conv taps, row index = (di*3 + dj)*Cin + c
    # cb_ref:  (1, Cp)      f32
    # fw_ref:  (Cp, NCp)    bf16
    # fb_ref:  (1, NCp)     f32
    # out_ref: (1, 8, NCp)  f32    lane/sublane-dense logits tile (row 0 is real)
    # acc_ref: (1, Cp)      f32    running GAP sum over row tiles
    t = pl.program_id(1)
    K = cw_ref.shape[0]            # 9 * Cin
    Cp = cw_ref.shape[1]

    @pl.when(t == 0)
    def _init():
        acc_ref[...] = jnp.zeros_like(acc_ref)

    # (T_H + 2, W + 2, Cin): main rows plus the two 1-row halo blocks.
    rows = jnp.concatenate([x_ref[0], h0_ref[0], h1_ref[0]], axis=0)

    # im2col LHS with column ordering k = (di*3 + dj)*Cin + c, built with two
    # lane-axis concats, then a single K = 9*Cin matmul on the MXU.
    wide = jnp.concatenate([rows[:, dj:dj + W, :] for dj in range(3)], axis=-1)
    lhs = jnp.concatenate([wide[di:di + T_H] for di in range(3)], axis=-1)
    lhs = lhs.reshape(T_H * W, K)

    feat = jnp.dot(lhs, cw_ref[...], preferred_element_type=jnp.float32)
    feat = jnp.maximum(feat + cb_ref[...], 0.0)

    # Partial global-average-pool sum for this row tile.
    acc_ref[...] += jnp.sum(feat, axis=0, keepdims=True)

    @pl.when(t == pl.num_programs(1) - 1)
    def _finalize():
        pooled = acc_ref[...] * inv_hw                                # (1, Cp) f32
        pooled8 = jnp.broadcast_to(pooled, (8, Cp)).astype(jnp.bfloat16)
        logits = jnp.dot(pooled8, fw_ref[...],
                         preferred_element_type=jnp.float32) + fb_ref[...]
        out_ref[0] = logits                                           # (8, NCp)


@functools.partial(jax.jit, static_argnames=("num_classes",))
def fish_classifier_forward(x_nchw, params, num_classes):
    """Forward pass. x_nchw: (B, Cin, H, W) float32 -> (B, num_classes) float32."""
    conv_w, conv_b, fc_w, fc_b = params     # (3,3,Cin,Chid), (Chid,), (Chid,NC), (NC,)
    B, Cin, H, W = x_nchw.shape
    Chid = conv_w.shape[-1]

    Cp = _lane_pad(Chid)                    # lane-dense hidden width
    NCp = _lane_pad(num_classes)            # lane-dense logits width

    T_H = _pick_row_tile(H, W, Cin, Cp)     # output rows per grid step (divides H)
    n_t = H // T_H

    # Single fused HBM pre-pass: NCHW -> NHWC, bf16, exactly 1 zero row/col border.
    x = jnp.transpose(x_nchw, (0, 2, 3, 1)).astype(jnp.bfloat16)
    x_pad = jnp.pad(x, ((0, 0), (1, 1), (1, 1), (0, 0)))        # (B, H+2, W+2, Cin)

    # Weights: taps flattened to a single (9*Cin, Cp) matmul RHS, bf16; biases f32.
    cw = jnp.pad(conv_w.reshape(9 * Cin, Chid),
                 ((0, 0), (0, Cp - Chid))).astype(jnp.bfloat16)
    cb = jnp.pad(conv_b, (0, Cp - Chid)).astype(jnp.float32).reshape(1, Cp)
    fw = jnp.pad(fc_w, ((0, Cp - Chid), (0, NCp - num_classes))).astype(jnp.bfloat16)
    fb = jnp.pad(fc_b, (0, NCp - num_classes)).astype(jnp.float32).reshape(1, NCp)

    kernel = functools.partial(_classifier_kernel, T_H=T_H, W=W,
                               inv_hw=1.0 / float(H * W))

    out3 = pl.pallas_call(
        kernel,
        out_shape=jax.ShapeDtypeStruct((B, 8, NCp), jnp.float32),
        grid_spec=pltpu.PrefetchScalarGridSpec(
            num_scalar_prefetch=0,
            grid=(B, n_t),
            in_specs=[
                # main T_H-row block of the padded image
                pl.BlockSpec((1, T_H, W + 2, Cin), lambda b, t: (b, t, 0, 0)),
                # the 2 halo rows just below it, fetched as two 1-row blocks
                pl.BlockSpec((1, 1, W + 2, Cin),
                             lambda b, t: (b, (t + 1) * T_H, 0, 0)),
                pl.BlockSpec((1, 1, W + 2, Cin),
                             lambda b, t: (b, (t + 1) * T_H + 1, 0, 0)),
                pl.BlockSpec((9 * Cin, Cp), lambda b, t: (0, 0)),
                pl.BlockSpec((1, Cp), lambda b, t: (0, 0)),
                pl.BlockSpec((Cp, NCp), lambda b, t: (0, 0)),
                pl.BlockSpec((1, NCp), lambda b, t: (0, 0)),
            ],
            out_specs=pl.BlockSpec((1, 8, NCp), lambda b, t: (b, 0, 0)),
            scratch_shapes=[pltpu.VMEM((1, Cp), jnp.float32)],
        ),
        compiler_params=pltpu.CompilerParams(
            dimension_semantics=("parallel", "arbitrary"),
            vmem_limit_bytes=48 * 1024 * 1024,
        ),
    )(x_pad, x_pad, x_pad, cw, cb, fw, fb)

    return out3[:, 0, :num_classes]


def init_params(key, cin, chid, num_classes):
    """Deterministic synthetic parameters (stand-in for the timm checkpoint)."""
    k1, k2, k3, k4 = jax.random.split(key, 4)
    fan_in = 9 * cin
    conv_w = (jax.random.normal(k1, (3, 3, cin, chid), jnp.float32)
              / jnp.sqrt(jnp.float32(fan_in)))
    conv_b = jax.random.normal(k2, (chid,), jnp.float32) * 0.01
    fc_w = (jax.random.normal(k3, (chid, num_classes), jnp.float32)
            / jnp.sqrt(jnp.float32(chid)))
    fc_b = jax.random.normal(k4, (num_classes,), jnp.float32) * 0.01
    return conv_w, conv_b, fc_w, fc_b


def _reference_forward(x_nchw, params, num_classes):
    """Plain-JAX reference mirroring the kernel's precision choices."""
    conv_w, conv_b, fc_w, fc_b = params
    x = jnp.transpose(x_nchw, (0, 2, 3, 1)).astype(jnp.bfloat16).astype(jnp.float32)
    w = conv_w.astype(jnp.bfloat16).astype(jnp.float32)
    B, H, W, Cin = x.shape
    xp = jnp.pad(x, ((0, 0), (1, 1), (1, 1), (0, 0)))
    acc = jnp.zeros((B, H, W, conv_w.shape[-1]), jnp.float32)
    for di in range(3):
        for dj in range(3):
            acc = acc + jnp.einsum("bhwc,cd->bhwd",
                                   xp[:, di:di + H, dj:dj + W, :], w[di, dj])
    feat = jnp.maximum(acc + conv_b[None, None, None, :], 0.0)
    pooled = jnp.mean(feat, axis=(1, 2))
    pooled = pooled.astype(jnp.bfloat16).astype(jnp.float32)
    fw = fc_w.astype(jnp.bfloat16).astype(jnp.float32)
    return pooled @ fw + fc_b[None, :]


if __name__ == "__main__":
    B, CIN, H, W = 2, 4, 16, 16
    CHID, NUM_CLASSES = 32, 8

    key = jax.random.PRNGKey(0)
    kx, kp = jax.random.split(key)
    x = jax.random.normal(kx, (B, CIN, H, W), jnp.float32)
    params = init_params(kp, CIN, CHID, NUM_CLASSES)

    logits = fish_classifier_forward(x, params, num_classes=NUM_CLASSES)
    jax.block_until_ready(logits)

    assert logits.shape == (B, NUM_CLASSES)
    assert logits.dtype == jnp.float32
    assert bool(jnp.all(jnp.isfinite(logits)))

    ref = _reference_forward(x, params, NUM_CLASSES)
    err = float(jnp.max(jnp.abs(logits - ref)))
    assert err < 5e-2, f"max abs err vs reference: {err}"

    print("KERNEL_OK")
</pallas_src>

<mosaic_0001>
module attributes {stable_mosaic.version = 11 : i64} {
  func.func @_classifier_kernel(%arg0: i32, %arg1: i32, %arg2: memref<1x16x18x4xbf16, #tpu.memory_space<vmem>>, %arg3: memref<1x1x18x4xbf16, #tpu.memory_space<vmem>>, %arg4: memref<1x1x18x4xbf16, #tpu.memory_space<vmem>>, %arg5: memref<36x128xbf16, #tpu.memory_space<vmem>>, %arg6: memref<1x128xf32, #tpu.memory_space<vmem>>, %arg7: memref<128x128xbf16, #tpu.memory_space<vmem>>, %arg8: memref<1x128xf32, #tpu.memory_space<vmem>>, %arg9: memref<1x8x128xf32, #tpu.memory_space<vmem>>, %arg10: memref<1x128xf32, #tpu.memory_space<vmem>>) attributes {dimension_semantics = [#tpu.dimension_semantics<parallel>, #tpu.dimension_semantics<arbitrary>], iteration_bounds = array<i64: 2, 1>, scalar_prefetch = 0 : i64, scratch_operands = 1 : i64, tpu.core_type = #tpu.core_type<tc>, window_params = [{transform_indices = @transform_0, window_bounds = array<i64: 1, 16, 18, 4>}, {transform_indices = @transform_1, window_bounds = array<i64: 1, 1, 18, 4>}, {transform_indices = @transform_2, window_bounds = array<i64: 1, 1, 18, 4>}, {pipeline_mode = #tpu.pipeline_mode<synchronous>, transform_indices = @transform_3, window_bounds = array<i64: 36, 128>}, {pipeline_mode = #tpu.pipeline_mode<synchronous>, transform_indices = @transform_4, window_bounds = array<i64: 1, 128>}, {pipeline_mode = #tpu.pipeline_mode<synchronous>, transform_indices = @transform_5, window_bounds = array<i64: 128, 128>}, {pipeline_mode = #tpu.pipeline_mode<synchronous>, transform_indices = @transform_6, window_bounds = array<i64: 1, 128>}, {transform_indices = @transform_7, window_bounds = array<i64: 1, 8, 128>}]} {
    %c0_i32 = arith.constant 0 : i32
    %0 = arith.cmpi eq, %arg1, %c0_i32 : i32
    %1 = arith.extui %0 : i1 to i32
    %c0_i32_0 = arith.constant 0 : i32
    %2 = arith.cmpi ne, %1, %c0_i32_0 : i32
    scf.if %2 {
      %cst_24 = arith.constant 0.000000e+00 : f32
      %34 = vector.broadcast %cst_24 : f32 to vector<1x128xf32>
      %c0_25 = arith.constant 0 : index
      %c0_26 = arith.constant 0 : index
      %35 = vector.load %arg10[%c0_25, %c0_26] : memref<1x128xf32, #tpu.memory_space<vmem>>, vector<1x128xf32>
      tpu.vector_store %arg10[%c0_25, %c0_26], %34 {strides = array<i32>} : memref<1x128xf32, #tpu.memory_space<vmem>>, vector<1x128xf32>,
    } else {
    }
    %c0 = arith.constant 0 : index
    %c0_1 = arith.constant 0 : index
    %c0_2 = arith.constant 0 : index
    %c0_3 = arith.constant 0 : index
    %3 = vector.load %arg2[%c0, %c0_1, %c0_2, %c0_3] : memref<1x16x18x4xbf16, #tpu.memory_space<vmem>>, vector<1x16x18x4xbf16>
    %4 = vector.shape_cast %3 : vector<1x16x18x4xbf16> to vector<16x18x4xbf16>
    %c0_4 = arith.constant 0 : index
    %c0_5 = arith.constant 0 : index
    %c0_6 = arith.constant 0 : index
    %c0_7 = arith.constant 0 : index
    %5 = vector.load %arg3[%c0_4, %c0_5, %c0_6, %c0_7] : memref<1x1x18x4xbf16, #tpu.memory_space<vmem>>, vector<1x1x18x4xbf16>
    %6 = vector.shape_cast %5 : vector<1x1x18x4xbf16> to vector<1x18x4xbf16>
    %c0_8 = arith.constant 0 : index
    %c0_9 = arith.constant 0 : index
    %c0_10 = arith.constant 0 : index
    %c0_11 = arith.constant 0 : index
    %7 = vector.load %arg4[%c0_8, %c0_9, %c0_10, %c0_11] : memref<1x1x18x4xbf16, #tpu.memory_space<vmem>>, vector<1x1x18x4xbf16>
    %8 = vector.shape_cast %7 : vector<1x1x18x4xbf16> to vector<1x18x4xbf16>
    %9 = tpu.concatenate %4, %6, %8 in 0 : vector<16x18x4xbf16>, vector<1x18x4xbf16>, vector<1x18x4xbf16> -> vector<18x18x4xbf16>
    %10 = vector.extract_strided_slice %9 {offsets = [0, 0, 0], sizes = [18, 16, 4], strides = [1, 1, 1]} : vector<18x18x4xbf16> to vector<18x16x4xbf16>
    %11 = vector.extract_strided_slice %9 {offsets = [0, 1, 0], sizes = [18, 16, 4], strides = [1, 1, 1]} : vector<18x18x4xbf16> to vector<18x16x4xbf16>
    %12 = vector.extract_strided_slice %9 {offsets = [0, 2, 0], sizes = [18, 16, 4], strides = [1, 1, 1]} : vector<18x18x4xbf16> to vector<18x16x4xbf16>
    %13 = tpu.concatenate %10, %11, %12 in 2 : vector<18x16x4xbf16>, vector<18x16x4xbf16>, vector<18x16x4xbf16> -> vector<18x16x12xbf16>
    %14 = vector.extract_strided_slice %13 {offsets = [0, 0, 0], sizes = [16, 16, 12], strides = [1, 1, 1]} : vector<18x16x12xbf16> to vector<16x16x12xbf16>
    %15 = vector.extract_strided_slice %13 {offsets = [1, 0, 0], sizes = [16, 16, 12], strides = [1, 1, 1]} : vector<18x16x12xbf16> to vector<16x16x12xbf16>
    %16 = vector.extract_strided_slice %13 {offsets = [2, 0, 0], sizes = [16, 16, 12], strides = [1, 1, 1]} : vector<18x16x12xbf16> to vector<16x16x12xbf16>
    %17 = tpu.concatenate %14, %15, %16 in 2 : vector<16x16x12xbf16>, vector<16x16x12xbf16>, vector<16x16x12xbf16> -> vector<16x16x36xbf16>
    %18 = vector.shape_cast %17 : vector<16x16x36xbf16> to vector<256x36xbf16>
    %c0_12 = arith.constant 0 : index
    %c0_13 = arith.constant 0 : index
    %19 = vector.load %arg5[%c0_12, %c0_13] : memref<36x128xbf16, #tpu.memory_space<vmem>>, vector<36x128xbf16>
    %cst = arith.constant dense<0.000000e+00> : vector<256x128xf32>
    %20 = tpu.matmul %18, %19, %cst {dimension_numbers = #tpu.dot_dimension_numbers<[1], [0], [0], [1], [0, 0, 1, 1], [], []>} : vector<256x36xbf16>, vector<36x128xbf16>, vector<256x128xf32> -> vector<256x128xf32>
    %c0_14 = arith.constant 0 : index
    %c0_15 = arith.constant 0 : index
    %21 = vector.load %arg6[%c0_14, %c0_15] : memref<1x128xf32, #tpu.memory_space<vmem>>, vector<1x128xf32>
    %22 = vector.broadcast %21 : vector<1x128xf32> to vector<256x128xf32>
    %23 = arith.addf %20, %22 : vector<256x128xf32>
    %cst_16 = arith.constant 0.000000e+00 : f32
    %24 = vector.broadcast %cst_16 : f32 to vector<256x128xf32>
    %25 = arith.maximumf %23, %24 : vector<256x128xf32>
    %c0_17 = arith.constant 0 : index
    %c0_18 = arith.constant 0 : index
    %26 = vector.load %arg10[%c0_17, %c0_18] : memref<1x128xf32, #tpu.memory_space<vmem>>, vector<1x128xf32>
    %cst_19 = arith.constant dense<0.000000e+00> : vector<128xf32>
    %27 = vector.multi_reduction <add>, %25, %cst_19 [0] : vector<256x128xf32> to vector<128xf32>
    %28 = vector.shape_cast %27 : vector<128xf32> to vector<1x128xf32>
    %29 = arith.addf %26, %28 : vector<1x128xf32>
    %c0_20 = arith.constant 0 : index
    %c0_21 = arith.constant 0 : index
    %30 = vector.load %arg10[%c0_20, %c0_21] : memref<1x128xf32, #tpu.memory_space<vmem>>, vector<1x128xf32>
    tpu.vector_store %arg10[%c0_20, %c0_21], %29 {strides = array<i32>} : memref<1x128xf32, #tpu.memory_space<vmem>>, vector<1x128xf32>,
    %c0_i32_22 = arith.constant 0 : i32
    %31 = arith.cmpi eq, %arg1, %c0_i32_22 : i32
    %32 = arith.extui %31 : i1 to i32
    %c0_i32_23 = arith.constant 0 : i32
    %33 = arith.cmpi ne, %32, %c0_i32_23 : i32
    scf.if %33 {
      %c0_24 = arith.constant 0 : index
      %c0_25 = arith.constant 0 : index
      %34 = vector.load %arg10[%c0_24, %c0_25] : memref<1x128xf32, #tpu.memory_space<vmem>>, vector<1x128xf32>
      %cst_26 = arith.constant 3.906250e-03 : f32
      %35 = vector.broadcast %cst_26 : f32 to vector<1x128xf32>
      %36 = arith.mulf %34, %35 : vector<1x128xf32>
      %37 = vector.shape_cast %36 : vector<1x128xf32> to vector<1x128xf32>
      %38 = vector.broadcast %37 : vector<1x128xf32> to vector<8x128xf32>
      %39 = arith.truncf %38 : vector<8x128xf32> to vector<8x128xbf16>
      %c0_27 = arith.constant 0 : index
      %c0_28 = arith.constant 0 : index
      %40 = vector.load %arg7[%c0_27, %c0_28] : memref<128x128xbf16, #tpu.memory_space<vmem>>, vector<128x128xbf16>
      %cst_29 = arith.constant dense<0.000000e+00> : vector<8x128xf32>
      %41 = tpu.matmul %39, %40, %cst_29 {dimension_numbers = #tpu.dot_dimension_numbers<[1], [0], [0], [1], [0, 0, 1, 1], [], []>} : vector<8x128xbf16>, vector<128x128xbf16>, vector<8x128xf32> -> vector<8x128xf32>
      %c0_30 = arith.constant 0 : index
      %c0_31 = arith.constant 0 : index
      %42 = vector.load %arg8[%c0_30, %c0_31] : memref<1x128xf32, #tpu.memory_space<vmem>>, vector<1x128xf32>
      %43 = vector.broadcast %42 : vector<1x128xf32> to vector<8x128xf32>
      %44 = arith.addf %41, %43 : vector<8x128xf32>
      %c0_32 = arith.constant 0 : index
      %c0_33 = arith.constant 0 : index
      %c0_34 = arith.constant 0 : index
      %45 = vector.load %arg9[%c0_32, %c0_33, %c0_34] : memref<1x8x128xf32, #tpu.memory_space<vmem>>, vector<1x8x128xf32>
      %46 = vector.shape_cast %45 : vector<1x8x128xf32> to vector<8x128xf32>
      %47 = vector.shape_cast %44 : vector<8x128xf32> to vector<1x8x128xf32>
      tpu.vector_store %arg9[%c0_32, %c0_33, %c0_34], %47 {strides = array<i32>} : memref<1x8x128xf32, #tpu.memory_space<vmem>>, vector<1x8x128xf32>,
    } else {
    }
    return
  }
  func.func @transform_0(%arg0: i32, %arg1: i32) -> (i32, i32, i32, i32) {
    %c0_i32 = arith.constant 0 : i32
    %c0_i32_0 = arith.constant 0 : i32
    %c0_i32_1 = arith.constant 0 : i32
    return %arg0, %arg1, %c0_i32, %c0_i32_0 : i32, i32, i32, i32
  }
  func.func @transform_1(%arg0: i32, %arg1: i32) -> (i32, i32, i32, i32) {
    %c1_i32 = arith.constant 1 : i32
    %0 = arith.addi %arg1, %c1_i32 : i32
    %c16_i32 = arith.constant 16 : i32
    %1 = arith.muli %0, %c16_i32 : i32
    %c0_i32 = arith.constant 0 : i32
    %c0_i32_0 = arith.constant 0 : i32
    %c0_i32_1 = arith.constant 0 : i32
    return %arg0, %1, %c0_i32, %c0_i32_0 : i32, i32, i32, i32
  }
  func.func @transform_2(%arg0: i32, %arg1: i32) -> (i32, i32, i32, i32) {
    %c1_i32 = arith.constant 1 : i32
    %0 = arith.addi %arg1, %c1_i32 : i32
    %c16_i32 = arith.constant 16 : i32
    %1 = arith.muli %0, %c16_i32 : i32
    %c1_i32_0 = arith.constant 1 : i32
    %2 = arith.addi %1, %c1_i32_0 : i32
    %c0_i32 = arith.constant 0 : i32
    %c0_i32_1 = arith.constant 0 : i32
    %c0_i32_2 = arith.constant 0 : i32
    return %arg0, %2, %c0_i32, %c0_i32_1 : i32, i32, i32, i32
  }
  func.func @transform_3(%arg0: i32, %arg1: i32) -> (i32, i32) {
    %c0_i32 = arith.constant 0 : i32
    %c0_i32_0 = arith.constant 0 : i32
    %c0_i32_1 = arith.constant 0 : i32
    return %c0_i32, %c0_i32_0 : i32, i32
  }
  func.func @transform_4(%arg0: i32, %arg1: i32) -> (i32, i32) {
    %c0_i32 = arith.constant 0 : i32
    %c0_i32_0 = arith.constant 0 : i32
    %c0_i32_1 = arith.constant 0 : i32
    return %c0_i32, %c0_i32_0 : i32, i32
  }
  func.func @transform_5(%arg0: i32, %arg1: i32) -> (i32, i32) {
    %c0_i32 = arith.constant 0 : i32
    %c0_i32_0 = arith.constant 0 : i32
    %c0_i32_1 = arith.constant 0 : i32
    return %c0_i32, %c0_i32_0 : i32, i32
  }
  func.func @transform_6(%arg0: i32, %arg1: i32) -> (i32, i32) {
    %c0_i32 = arith.constant 0 : i32
    %c0_i32_0 = arith.constant 0 : i32
    %c0_i32_1 = arith.constant 0 : i32
    return %c0_i32, %c0_i32_0 : i32, i32
  }
  func.func @transform_7(%arg0: i32, %arg1: i32) -> (i32, i32, i32) {
    %c0_i32 = arith.constant 0 : i32
    %c0_i32_0 = arith.constant 0 : i32
    %c0_i32_1 = arith.constant 0 : i32
    return %arg0, %c0_i32, %c0_i32_0 : i32, i32, i32
  }
}

</mosaic_0001>

<llo_original>
// kernel: fish_classifier_forward.1
$region0: #{fish_classifier_forward.1}
  #allocation0 [shape = 'u32[]', space=smem, size = 0x4, offset = 0x4, fixed_abs, tag = 'smem constant byte address 0x4 - core index']
  #allocation1 [shape = 'u32[144,128]{1,0:T(1,128)}', space=vmem, size = 0x12000, scoped, tag = 'internal scratch']
  #allocation2 [shape = 'f32[1,128]{1,0:T(1,128)}', space=vmem, size = 0x200, scoped, tag = 'scratch operand']
  %s0 = inlined_call_operand.vmem [shape: bf16[2,18,18,4], index: 0, kind: input, shape index: {}, may-alias: {0,1,2}]
  %s1 = inlined_call_operand.vmem [shape: bf16[2,18,18,4], index: 1, kind: input, shape index: {}, may-alias: {0,1,2}]
  %s2 = inlined_call_operand.vmem [shape: bf16[2,18,18,4], index: 2, kind: input, shape index: {}, may-alias: {0,1,2}]
  %s3 = inlined_call_operand.vmem [shape: bf16[36,128], index: 3, kind: input, shape index: {}]
  %s4 = inlined_call_operand.vmem [shape: f32[1,128], index: 4, kind: input, shape index: {}]
  %s5 = inlined_call_operand.vmem [shape: bf16[128,128], index: 5, kind: input, shape index: {}]
  %s6 = inlined_call_operand.vmem [shape: f32[1,128], index: 6, kind: input, shape index: {}]
  %s7 = inlined_call_operand.vmem [shape: f32[2,8,128], index: 7, kind: output, shape index: {}]
  %s8 = sld [smem:[#allocation0]]
  $region69: #{fish_classifier_forward.1} parent=0
    _
  %s10 = ssub.s32 1, %s8
  %s11 = scalar_select 0, %s10, %s8
  loop: start=0, step=1, limit=4
  $region2: #{fish_classifier_forward.1} parent=0 // loop_pre_header
    _
  $region3: #{fish_classifier_forward.1} parent=0 // loop_header
    %s13 = sphi 0, %s17
    %p14 = scmp.ge.s32.totalorder %s13, 4
    %s20 = sphi 0, %s32
    %s21 = sphi 0, %s28
    %s22 = sphi 0, %s20
    %s23 = sphi 0, %s21
    %s24 = sphi 0, %s22
    %s25 = sphi 0, %s23
    %s37 = sphi 0, %s39
    %s40 = sphi 0, %s37
    %s41 = sphi 0, %s40
    %s57 = sphi 0, %s41
    %s69 = sphi 0, %s71
    %s72 = sphi 0, %s69
    %s73 = sphi 0, %s72
    %s89 = sphi 0, %s73
    %s103 = sphi 0, %s105
    %s106 = sphi 0, %s103
    %s107 = sphi 0, %s106
    %s123 = sphi 0, %s107
    %s127 = sphi 0, %s127
    %s129 = sphi 0, %s127
    %s130 = sphi 0, %s129
    %s144 = sphi 0, %s130
    %s148 = sphi 0, %s148
    %s150 = sphi 0, %s148
    %s151 = sphi 0, %s150
    %s165 = sphi 0, %s151
    %s169 = sphi 0, %s169
    %s171 = sphi 0, %s169
    %s172 = sphi 0, %s171
    %s186 = sphi 0, %s172
    %s190 = sphi 0, %s190
    %s192 = sphi 0, %s190
    %s193 = sphi 0, %s192
    %s207 = sphi 0, %s193
    %s213 = sphi 0, %s215
    %s216 = sphi 0, %s213
    %s217 = sphi 0, %s216
    %s233 = sphi 0, %s217
  $region4: #{fish_classifier_forward.1} parent=0 // loop_header_branch
    %16 = sbr.rel (%p14) target = $region8
  $region5: #{fish_classifier_forward.1} parent=0 // loop_body
    %s18 = ssub.s32 %s13, 1
    %s19 = ssub.s32 %s13, 2
    %s26 = sadd.s32 1, %s21
    %p27 = scmp.ge.s32.totalorder %s26, 1
    %s28 = scalar_select %p27, 0, %s26
    %s29 = sadd.s32 1, %s20
    %s30 = scalar_select %p27, %s29, %s20
    %p31 = scmp.ge.s32.totalorder %s30, 2
    %s32 = scalar_select %p31, 0, %s30
    %s33 = ssub.s32 %s20, %s32
    %s34 = ssub.s32 %s21, %s28
    %s35 = sor.u32 %s33, %s34
    %p36 = scmp.eq.s32.totalorder %s35, 0
    %s38 = sadd.s32 %s37, 1
    %s39 = scalar_select %p36, %s37, %s38
    %p42 = pneg %p36
    %p43 = scmp.eq.s32.totalorder %s13, 1
    %p44 = por %p42, %p43
    %p45 = scmp.ne.s32.totalorder %s37, %s40
    %p46 = scmp.eq.s32.totalorder %s13, 0
    %p47 = por %p45, %p46
    %p48 = scmp.ne.s32.totalorder %s37, %s40
    %p49 = scmp.eq.s32.totalorder %s18, 1
    %p50 = por %p48, %p49
    %p51 = scmp.ne.s32.totalorder %s40, %s41
    %p52 = scmp.eq.s32.totalorder %s18, 0
    %p53 = por %p51, %p52
    %p54 = scmp.ne.s32.totalorder %s40, %s41
    %p55 = scmp.eq.s32.totalorder %s19, 1
    %p56 = por %p54, %p55
    %p58 = scmp.ne.s32.totalorder %s41, %s57
    %p59 = scmp.eq.s32.totalorder %s19, 0
    %p60 = por %p58, %p59
    %s61 = sadd.s32 %s21, 1
    %s62 = smul.u32 %s61, 16
    %s63 = sadd.s32 %s28, 1
    %s64 = smul.u32 %s63, 16
    %s65 = ssub.s32 %s20, %s32
    %s66 = ssub.s32 %s62, %s64
    %s67 = sor.u32 %s65, %s66
    %p68 = scmp.eq.s32.totalorder %s67, 0
    %s70 = sadd.s32 %s69, 1
    %s71 = scalar_select %p68, %s69, %s70
    %p74 = pneg %p68
    %p75 = scmp.eq.s32.totalorder %s13, 1
    %p76 = por %p74, %p75
    %p77 = scmp.ne.s32.totalorder %s69, %s72
    %p78 = scmp.eq.s32.totalorder %s13, 0
    %p79 = por %p77, %p78
    %p80 = scmp.ne.s32.totalorder %s69, %s72
    %p81 = scmp.eq.s32.totalorder %s18, 1
    %p82 = por %p80, %p81
    %p83 = scmp.ne.s32.totalorder %s72, %s73
    %p84 = scmp.eq.s32.totalorder %s18, 0
    %p85 = por %p83, %p84
    %p86 = scmp.ne.s32.totalorder %s72, %s73
    %p87 = scmp.eq.s32.totalorder %s19, 1
    %p88 = por %p86, %p87
    %p90 = scmp.ne.s32.totalorder %s73, %s89
    %p91 = scmp.eq.s32.totalorder %s19, 0
    %p92 = por %p90, %p91
    %s93 = sadd.s32 %s21, 1
    %s94 = smul.u32 %s93, 16
    %s95 = sadd.s32 %s94, 1
    %s96 = sadd.s32 %s28, 1
    %s97 = smul.u32 %s96, 16
    %s98 = sadd.s32 %s97, 1
    %s99 = ssub.s32 %s20, %s32
    %s100 = ssub.s32 %s95, %s98
    %s101 = sor.u32 %s99, %s100
    %p102 = scmp.eq.s32.totalorder %s101, 0
    %s104 = sadd.s32 %s103, 1
    %s105 = scalar_select %p102, %s103, %s104
    %p108 = pneg %p102
    %p109 = scmp.eq.s32.totalorder %s13, 1
    %p110 = por %p108, %p109
    %p111 = scmp.ne.s32.totalorder %s103, %s106
    %p112 = scmp.eq.s32.totalorder %s13, 0
    %p113 = por %p111, %p112
    %p114 = scmp.ne.s32.totalorder %s103, %s106
    %p115 = scmp.eq.s32.totalorder %s18, 1
    %p116 = por %p114, %p115
    %p117 = scmp.ne.s32.totalorder %s106, %s107
    %p118 = scmp.eq.s32.totalorder %s18, 0
    %p119 = por %p117, %p118
    %p120 = scmp.ne.s32.totalorder %s106, %s107
    %p121 = scmp.eq.s32.totalorder %s19, 1
    %p122 = por %p120, %p121
    %p124 = scmp.ne.s32.totalorder %s107, %s123
    %p125 = scmp.eq.s32.totalorder %s19, 0
    %p126 = por %p124, %p125
    %s128 = sadd.s32 %s127, 1
    %p131 = scmp.eq.s32.totalorder %s13, 1
    %p132 = scmp.ne.s32.totalorder %s127, %s129
    %p133 = scmp.eq.s32.totalorder %s13, 0
    %p134 = por %p132, %p133
    %p135 = scmp.ne.s32.totalorder %s127, %s129
    %p136 = scmp.eq.s32.totalorder %s18, 1
    %p137 = por %p135, %p136
    %p138 = scmp.ne.s32.totalorder %s129, %s130
    %p139 = scmp.eq.s32.totalorder %s18, 0
    %p140 = por %p138, %p139
    %p141 = scmp.ne.s32.totalorder %s129, %s130
    %p142 = scmp.eq.s32.totalorder %s19, 1
    %p143 = por %p141, %p142
    %p145 = scmp.ne.s32.totalorder %s130, %s144
    %p146 = scmp.eq.s32.totalorder %s19, 0
    %p147 = por %p145, %p146
    %s149 = sadd.s32 %s148, 1
    %p152 = scmp.eq.s32.totalorder %s13, 1
    %p153 = scmp.ne.s32.totalorder %s148, %s150
    %p154 = scmp.eq.s32.totalorder %s13, 0
    %p155 = por %p153, %p154
    %p156 = scmp.ne.s32.totalorder %s148, %s150
    %p157 = scmp.eq.s32.totalorder %s18, 1
    %p158 = por %p156, %p157
    %p159 = scmp.ne.s32.totalorder %s150, %s151
    %p160 = scmp.eq.s32.totalorder %s18, 0
    %p161 = por %p159, %p160
    %p162 = scmp.ne.s32.totalorder %s150, %s151
    %p163 = scmp.eq.s32.totalorder %s19, 1
    %p164 = por %p162, %p163
    %p166 = scmp.ne.s32.totalorder %s151, %s165
    %p167 = scmp.eq.s32.totalorder %s19, 0
    %p168 = por %p166, %p167
    %s170 = sadd.s32 %s169, 1
    %p173 = scmp.eq.s32.totalorder %s13, 1
    %p174 = scmp.ne.s32.totalorder %s169, %s171
    %p175 = scmp.eq.s32.totalorder %s13, 0
    %p176 = por %p174, %p175
    %p177 = scmp.ne.s32.totalorder %s169, %s171
    %p178 = scmp.eq.s32.totalorder %s18, 1
    %p179 = por %p177, %p178
    %p180 = scmp.ne.s32.totalorder %s171, %s172
    %p181 = scmp.eq.s32.totalorder %s18, 0
    %p182 = por %p180, %p181
    %p183 = scmp.ne.s32.totalorder %s171, %s172
    %p184 = scmp.eq.s32.totalorder %s19, 1
    %p185 = por %p183, %p184
    %p187 = scmp.ne.s32.totalorder %s172, %s186
    %p188 = scmp.eq.s32.totalorder %s19, 0
    %p189 = por %p187, %p188
    %s191 = sadd.s32 %s190, 1
    %p194 = scmp.eq.s32.totalorder %s13, 1
    %p195 = scmp.ne.s32.totalorder %s190, %s192
    %p196 = scmp.eq.s32.totalorder %s13, 0
    %p197 = por %p195, %p196
    %p198 = scmp.ne.s32.totalorder %s190, %s192
    %p199 = scmp.eq.s32.totalorder %s18, 1
    %p200 = por %p198, %p199
    %p201 = scmp.ne.s32.totalorder %s192, %s193
    %p202 = scmp.eq.s32.totalorder %s18, 0
    %p203 = por %p201, %p202
    %p204 = scmp.ne.s32.totalorder %s192, %s193
    %p205 = scmp.eq.s32.totalorder %s19, 1
    %p206 = por %p204, %p205
    %p208 = scmp.ne.s32.totalorder %s193, %s207
    %p209 = scmp.eq.s32.totalorder %s19, 0
    %p210 = por %p208, %p209
    %s211 = ssub.s32 %s20, %s32
    %p212 = scmp.eq.s32.totalorder %s211, 0
    %s214 = sadd.s32 %s213, 1
    %s215 = scalar_select %p212, %s213, %s214
    %p218 = pneg %p212
    %p219 = scmp.eq.s32.totalorder %s13, 1
    %p220 = por %p218, %p219
    %p221 = scmp.ne.s32.totalorder %s213, %s216
    %p222 = scmp.eq.s32.totalorder %s13, 0
    %p223 = por %p221, %p222
    %p224 = scmp.ne.s32.totalorder %s213, %s216
    %p225 = scmp.eq.s32.totalorder %s18, 1
    %p226 = por %p224, %p225
    %p227 = scmp.ne.s32.totalorder %s216, %s217
    %p228 = scmp.eq.s32.totalorder %s18, 0
    %p229 = por %p227, %p228
    %p230 = scmp.ne.s32.totalorder %s216, %s217
    %p231 = scmp.eq.s32.totalorder %s19, 1
    %p232 = por %p230, %p231
    %p234 = scmp.ne.s32.totalorder %s217, %s233
    %p235 = scmp.eq.s32.totalorder %s19, 0
    %p236 = por %p234, %p235
    %p237 = scmp.le.s32.totalorder 1, %s13
    %p238 = scmp.lt.s32.totalorder %s13, 3
    %p239 = pnand %p237, %p238
    %p240 = pneg %p239
    // Predicated region
    $region9: #{fish_classifier_forward.1} parent=5 // pred_check
      _
    $region10: #{fish_classifier_forward.1} parent=5 // pred_check_branch
      %242 = sbr.rel (%p239) target = $region12
    $region11: #{fish_classifier_forward.1} parent=5 // pred_region
      %s243 = ssub.s32 %s13, 1
      // Predicated region
      $region13: #{fish_classifier_forward.1} parent=11 // pred_check
        %p244 = pneg %p140
      $region14: #{fish_classifier_forward.1} parent=11 // pred_check_branch
        %246 = sbr.rel (%p244) target = $region16
      $region15: #{fish_classifier_forward.1} parent=11 // pred_region
        _
      $region16: #{fish_classifier_forward.1} parent=11 // pred_fallthru
        _
      // Predicated region
      $region17: #{fish_classifier_forward.1} parent=11 // pred_check
        %p247 = pneg %p161
      $region18: #{fish_classifier_forward.1} parent=11 // pred_check_branch
        %249 = sbr.rel (%p247) target = $region20
      $region19: #{fish_classifier_forward.1} parent=11 // pred_region
        _
      $region20: #{fish_classifier_forward.1} parent=11 // pred_fallthru
        _
      // Predicated region
      $region21: #{fish_classifier_forward.1} parent=11 // pred_check
        %p250 = pneg %p182
      $region22: #{fish_classifier_forward.1} parent=11 // pred_check_branch
        %252 = sbr.rel (%p250) target = $region24
      $region23: #{fish_classifier_forward.1} parent=11 // pred_region
        _
      $region24: #{fish_classifier_forward.1} parent=11 // pred_fallthru
        _
      // Predicated region
      $region25: #{fish_classifier_forward.1} parent=11 // pred_check
        %p253 = pneg %p203
      $region26: #{fish_classifier_forward.1} parent=11 // pred_check_branch
        %255 = sbr.rel (%p253) target = $region28
      $region27: #{fish_classifier_forward.1} parent=11 // pred_region
        _
      $region28: #{fish_classifier_forward.1} parent=11 // pred_fallthru
        _
    $region12: #{fish_classifier_forward.1} parent=5 // pred_fallthru
      _
    %p256 = scmp.lt.s32.totalorder %s13, 2
    // Predicated region
    $region29: #{fish_classifier_forward.1} parent=5 // pred_check
      %p257 = pneg %p256
    $region30: #{fish_classifier_forward.1} parent=5 // pred_check_branch
      %259 = sbr.rel (%p257) target = $region32
    $region31: #{fish_classifier_forward.1} parent=5 // pred_region
      // Predicated region
      $region33: #{fish_classifier_forward.1} parent=31 // pred_check
        %p260 = pneg %p47
      $region34: #{fish_classifier_forward.1} parent=31 // pred_check_branch
        %262 = sbr.rel (%p260) target = $region36
      $region35: #{fish_classifier_forward.1} parent=31 // pred_region
        %s263 = smul.u32 16, %s21
        %s264 = ssub.s32 18, %s263
        %p265 = scmp.lt.s32.totalorder %s264, 16
        %s266 = scalar_select %p265, %s264, 16
        %s267 = smul.u32 64, %s266
        %s268 = smul.u32 %s267, 3
        %p269 = scmp.lt.s32.totalorder %s20, 1
        %s270 = scalar_select %p269, %s20, 1
        %p271 = scmp.lt.s32.totalorder %s263, 17
        %s272 = scalar_select %p271, %s263, 17
        %s273 = smul.addr %s272, 3
        %s274 = smul.addr %s270, 54
        %s275 = sadd.s32 %s273, %s274
        %s276 = smul.addr %s275, 4
        %s277 = scalar_lea.vmem %s0, %s276
        %s278 = smul.u32 16, %s21
        %s279 = ssub.s32 18, %s278
        %p280 = scmp.lt.s32.totalorder %s279, 16
        %s281 = scalar_select %p280, %s279, 16
        %s282 = smul.u32 64, %s281
        %s283 = smul.u32 %s282, 3
      $region36: #{fish_classifier_forward.1} parent=31 // pred_fallthru
        _
      // Predicated region
      $region37: #{fish_classifier_forward.1} parent=31 // pred_check
        %p284 = pneg %p79
      $region38: #{fish_classifier_forward.1} parent=31 // pred_check_branch
        %286 = sbr.rel (%p284) target = $region40
      $region39: #{fish_classifier_forward.1} parent=31 // pred_region
        %s287 = sadd.s32 %s21, 1
        %s288 = smul.u32 %s287, 16
        %p289 = scmp.lt.s32.totalorder %s20, 1
        %s290 = scalar_select %p289, %s20, 1
        %p291 = scmp.lt.s32.totalorder %s288, 17
        %s292 = scalar_select %p291, %s288, 17
        %s293 = smul.addr %s292, 3
        %s294 = smul.addr %s290, 54
        %s295 = sadd.s32 %s293, %s294
        %s296 = smul.addr %s295, 4
        %s297 = scalar_lea.vmem %s1, %s296
        %s298 = sadd.s32 %s21, 1
        %s299 = smul.u32 %s298, 16
      $region40: #{fish_classifier_forward.1} parent=31 // pred_fallthru
        _
      // Predicated region
      $region41: #{fish_classifier_forward.1} parent=31 // pred_check
        %p300 = pneg %p113
      $region42: #{fish_classifier_forward.1} parent=31 // pred_check_branch
        %302 = sbr.rel (%p300) target = $region44
      $region43: #{fish_classifier_forward.1} parent=31 // pred_region
        %s303 = sadd.s32 %s21, 1
        %s304 = smul.u32 %s303, 16
        %s305 = sadd.s32 %s304, 1
        %p306 = scmp.lt.s32.totalorder %s20, 1
        %s307 = scalar_select %p306, %s20, 1
        %p308 = scmp.lt.s32.totalorder %s305, 17
        %s309 = scalar_select %p308, %s305, 17
        %s310 = smul.addr %s309, 3
        %s311 = smul.addr %s307, 54
        %s312 = sadd.s32 %s310, %s311
        %s313 = smul.addr %s312, 4
        %s314 = scalar_lea.vmem %s2, %s313
        %s315 = sadd.s32 %s21, 1
        %s316 = smul.u32 %s315, 16
        %s317 = sadd.s32 %s316, 1
      $region44: #{fish_classifier_forward.1} parent=31 // pred_fallthru
        _
    $region32: #{fish_classifier_forward.1} parent=5 // pred_fallthru
      _
    %p318 = scmp.le.s32.totalorder 1, %s13
    %p319 = scmp.lt.s32.totalorder %s13, 3
    %p320 = pnand %p318, %p319
    %p321 = pneg %p320
    // Predicated region
    $region45: #{fish_classifier_forward.1} parent=5 // pred_check
      _
    $region46: #{fish_classifier_forward.1} parent=5 // pred_check_branch
      %323 = sbr.rel (%p320) target = $region48
    $region47: #{fish_classifier_forward.1} parent=5 // pred_region
      %s324 = ssub.s32 %s13, 1
      %s325 = smul.u32 16, %s23
      %s326 = ssub.s32 18, %s325
      %p327 = scmp.lt.s32.totalorder %s326, 16
      %s328 = scalar_select %p327, %s326, 16
      %s329 = smul.u32 64, %s328
      %s330 = smul.u32 %s329, 3
      %p331 = scmp.lt.s32.totalorder %s22, 1
      %s332 = scalar_select %p331, %s22, 1
      %p333 = scmp.lt.s32.totalorder %s325, 17
      %s334 = scalar_select %p333, %s325, 17
      %s335 = smul.addr %s334, 3
      %s336 = smul.addr %s332, 54
      %s337 = sadd.s32 %s335, %s336
      %s338 = smul.addr %s337, 4
      %s339 = scalar_lea.vmem %s0, %s338
      %p340 = pneg %p53
      %p341 = pneg %p50
      %s342 = sadd.s32 %s23, 1
      %s343 = smul.u32 %s342, 16
      %p344 = scmp.lt.s32.totalorder %s22, 1
      %s345 = scalar_select %p344, %s22, 1
      %p346 = scmp.lt.s32.totalorder %s343, 17
      %s347 = scalar_select %p346, %s343, 17
      %s348 = smul.addr %s347, 3
      %s349 = smul.addr %s345, 54
      %s350 = sadd.s32 %s348, %s349
      %s351 = smul.addr %s350, 4
      %s352 = scalar_lea.vmem %s1, %s351
      %p353 = pneg %p85
      %p354 = pneg %p82
      %s355 = sadd.s32 %s23, 1
      %s356 = smul.u32 %s355, 16
      %s357 = sadd.s32 %s356, 1
      %p358 = scmp.lt.s32.totalorder %s22, 1
      %s359 = scalar_select %p358, %s22, 1
      %p360 = scmp.lt.s32.totalorder %s357, 17
      %s361 = scalar_select %p360, %s357, 17
      %s362 = smul.addr %s361, 3
      %s363 = smul.addr %s359, 54
      %s364 = sadd.s32 %s362, %s363
      %s365 = smul.addr %s364, 4
      %s366 = scalar_lea.vmem %s2, %s365
      %p367 = pneg %p119
      %p368 = pneg %p116
      %p369 = pneg %p140
      %p370 = pneg %p137
      %p371 = pneg %p161
      %p372 = pneg %p158
      %p373 = pneg %p182
      %p374 = pneg %p179
      %p375 = pneg %p203
      %p376 = pneg %p200
      %p377 = pneg %p229
      %p378 = pneg %p226
      %p379 = scmp.lt.s32.totalorder %s22, 1
      %s380 = scalar_select %p379, %s22, 1
      %s381 = smul.addr %s380, 8
      %s382 = scalar_lea.vmem %s7, %s381
      %s383 = smul.u32 16, %s23
      %s384 = ssub.s32 18, %s383
      %p385 = scmp.lt.s32.totalorder %s384, 16
      %s386 = scalar_select %p385, %s384, 16
      %s387 = smul.u32 64, %s386
      %s388 = smul.u32 %s387, 3
      %p389 = scmp.lt.s32.totalorder %s22, 1
      %s390 = scalar_select %p389, %s22, 1
      %p391 = scmp.lt.s32.totalorder %s383, 17
      %s392 = scalar_select %p391, %s383, 17
      %s393 = smul.addr %s392, 3
      %s394 = smul.addr %s390, 54
      %s395 = sadd.s32 %s393, %s394
      %s396 = smul.addr %s395, 4
      %s397 = scalar_lea.vmem %s0, %s396
      %s398 = smul.u32 16, %s23
      %s399 = ssub.s32 18, %s398
      %p400 = scmp.lt.s32.totalorder %s399, 16
      %s401 = scalar_select %p400, %s399, 16
      %s402 = smul.u32 64, %s401
      %s403 = smul.u32 %s402, 3
      %s404 = sadd.s32 %s23, 1
      %s405 = smul.u32 %s404, 16
      %p406 = scmp.lt.s32.totalorder %s22, 1
      %s407 = scalar_select %p406, %s22, 1
      %p408 = scmp.lt.s32.totalorder %s405, 17
      %s409 = scalar_select %p408, %s405, 17
      %s410 = smul.addr %s409, 3
      %s411 = smul.addr %s407, 54
      %s412 = sadd.s32 %s410, %s411
      %s413 = smul.addr %s412, 4
      %s414 = scalar_lea.vmem %s1, %s413
      %s415 = sadd.s32 %s23, 1
      %s416 = smul.u32 %s415, 16
      %s417 = sadd.s32 %s23, 1
      %s418 = smul.u32 %s417, 16
      %s419 = sadd.s32 %s418, 1
      %p420 = scmp.lt.s32.totalorder %s22, 1
      %s421 = scalar_select %p420, %s22, 1
      %p422 = scmp.lt.s32.totalorder %s419, 17
      %s423 = scalar_select %p422, %s419, 17
      %s424 = smul.addr %s423, 3
      %s425 = smul.addr %s421, 54
      %s426 = sadd.s32 %s424, %s425
      %s427 = smul.addr %s426, 4
      %s428 = scalar_lea.vmem %s2, %s427
      %s429 = sadd.s32 %s23, 1
      %s430 = smul.u32 %s429, 16
      %s431 = sadd.s32 %s430, 1
      %p432 = scmp.lt.s32.totalorder %s22, 1
      %s433 = scalar_select %p432, %s22, 1
      %s434 = smul.addr %s433, 8
      %s435 = scalar_lea.vmem %s7, %s434
      %p437 = scmp.eq.s32.totalorder %s23, 0
      // Predicated region
      $region49: #{fish_classifier_forward.1} parent=47 // pred_check
        %p438 = pneg %p437
      $region50: #{fish_classifier_forward.1} parent=47 // pred_check_branch
        %440 = sbr.rel (%p438) target = $region52
      $region51: #{fish_classifier_forward.1} parent=47 // pred_region
        %441 = vst [vmem:[#allocation2] sm:$0x1] 0.0
      $region52: #{fish_classifier_forward.1} parent=47 // pred_fallthru
        _
      %v442 = vld [vmem:[%s397] sm:$0xf]
      %v443 = vld [vmem:[%s397 + $0x4] sm:$0xf]
      %v444 = vld [vmem:[%s397 + $0x8] sm:$0x1]
      %v445 = vld [vmem:[%s397 + $0xc] sm:$0xf]
      %v446 = vld [vmem:[%s397 + $0x10] sm:$0xf]
      %v447 = vld [vmem:[%s397 + $0x14] sm:$0x1]
      %v448 = vld [vmem:[%s397 + $0x18] sm:$0xf]
      %v449 = vld [vmem:[%s397 + $0x1c] sm:$0xf]
      %v450 = vld [vmem:[%s397 + $0x20] sm:$0x1]
      %v451 = vld [vmem:[%s397 + $0x24] sm:$0xf]
      %v452 = vld [vmem:[%s397 + $0x28] sm:$0xf]
      %v453 = vld [vmem:[%s397 + $0x2c] sm:$0x1]
      %v454 = vld [vmem:[%s397 + $0x30] sm:$0xf]
      %v455 = vld [vmem:[%s397 + $0x34] sm:$0xf]
      %v456 = vld [vmem:[%s397 + $0x38] sm:$0x1]
      %v457 = vld [vmem:[%s397 + $0x3c] sm:$0xf]
      %v458 = vld [vmem:[%s397 + $0x40] sm:$0xf]
      %v459 = vld [vmem:[%s397 + $0x44] sm:$0x1]
      %v460 = vld [vmem:[%s397 + $0x48] sm:$0xf]
      %v461 = vld [vmem:[%s397 + $0x4c] sm:$0xf]
      %v462 = vld [vmem:[%s397 + $0x50] sm:$0x1]
      %v463 = vld [vmem:[%s397 + $0x54] sm:$0xf]
      %v464 = vld [vmem:[%s397 + $0x58] sm:$0xf]
      %v465 = vld [vmem:[%s397 + $0x5c] sm:$0x1]
      %v466 = vld [vmem:[%s397 + $0x60] sm:$0xf]
      %v467 = vld [vmem:[%s397 + $0x64] sm:$0xf]
      %v468 = vld [vmem:[%s397 + $0x68] sm:$0x1]
      %v469 = vld [vmem:[%s397 + $0x6c] sm:$0xf]
      %v470 = vld [vmem:[%s397 + $0x70] sm:$0xf]
      %v471 = vld [vmem:[%s397 + $0x74] sm:$0x1]
      %v472 = vld [vmem:[%s397 + $0x78] sm:$0xf]
      %v473 = vld [vmem:[%s397 + $0x7c] sm:$0xf]
      %v474 = vld [vmem:[%s397 + $0x80] sm:$0x1]
      %v475 = vld [vmem:[%s397 + $0x84] sm:$0xf]
      %v476 = vld [vmem:[%s397 + $0x88] sm:$0xf]
      %v477 = vld [vmem:[%s397 + $0x8c] sm:$0x1]
      %v478 = vld [vmem:[%s397 + $0x90] sm:$0xf]
      %v479 = vld [vmem:[%s397 + $0x94] sm:$0xf]
      %v480 = vld [vmem:[%s397 + $0x98] sm:$0x1]
      %v481 = vld [vmem:[%s397 + $0x9c] sm:$0xf]
      %v482 = vld [vmem:[%s397 + $0xa0] sm:$0xf]
      %v483 = vld [vmem:[%s397 + $0xa4] sm:$0x1]
      %v484 = vld [vmem:[%s397 + $0xa8] sm:$0xf]
      %v485 = vld [vmem:[%s397 + $0xac] sm:$0xf]
      %v486 = vld [vmem:[%s397 + $0xb0] sm:$0x1]
      %v487 = vld [vmem:[%s397 + $0xb4] sm:$0xf]
      %v488 = vld [vmem:[%s397 + $0xb8] sm:$0xf]
      %v489 = vld [vmem:[%s397 + $0xbc] sm:$0x1]
      %v490 = vld [vmem:[%s414] sm:$0xf]
      %v491 = vld [vmem:[%s414 + $0x4] sm:$0xf]
      %v492 = vld [vmem:[%s414 + $0x8] sm:$0x1]
      %v493 = vld [vmem:[%s428] sm:$0xf]
      %v494 = vld [vmem:[%s428 + $0x4] sm:$0xf]
      %v495 = vld [vmem:[%s428 + $0x8] sm:$0x1]
      %v532 = vunpack.c.l.b16 %v442
      %v533 = vunpack.c.l.b16 %v443
      %v534 = vunpack.c.l.b16 %v445
      %v535 = vunpack.c.l.b16 %v446
      %v536 = vunpack.c.l.b16 %v448
      %v537 = vunpack.c.l.b16 %v449
      %v538 = vunpack.c.l.b16 %v451
      %v539 = vunpack.c.l.b16 %v452
      %v540 = vunpack.c.l.b16 %v454
      %v541 = vunpack.c.l.b16 %v455
      %v542 = vunpack.c.l.b16 %v457
      %v543 = vunpack.c.l.b16 %v458
      %v544 = vunpack.c.l.b16 %v460
      %v545 = vunpack.c.l.b16 %v461
      %v546 = vunpack.c.l.b16 %v463
      %v547 = vunpack.c.l.b16 %v464
      %v548 = vunpack.c.l.b16 %v466
      %v549 = vunpack.c.l.b16 %v467
      %v550 = vunpack.c.l.b16 %v469
      %v551 = vunpack.c.l.b16 %v470
      %v552 = vunpack.c.l.b16 %v472
      %v553 = vunpack.c.l.b16 %v473
      %v554 = vunpack.c.l.b16 %v475
      %v555 = vunpack.c.l.b16 %v476
      %v556 = vunpack.c.l.b16 %v478
      %v557 = vunpack.c.l.b16 %v479
      %v558 = vunpack.c.l.b16 %v481
      %v559 = vunpack.c.l.b16 %v482
      %v560 = vunpack.c.l.b16 %v484
      %v561 = vunpack.c.l.b16 %v485
      %v562 = vunpack.c.l.b16 %v487
      %v563 = vunpack.c.l.b16 %v488
      %v564 = vunpack.c.l.b16 %v490
      %v565 = vunpack.c.l.b16 %v491
      %v566 = vunpack.c.l.b16 %v493
      %v567 = vunpack.c.l.b16 %v494
      %v568 = vpack.c.b16 %v533, %v532
      %v569 = vpack.c.b16 %v535, %v534
      %v570 = vpack.c.b16 %v537, %v536
      %v571 = vpack.c.b16 %v539, %v538
      %v572 = vpack.c.b16 %v541, %v540
      %v573 = vpack.c.b16 %v543, %v542
      %v574 = vpack.c.b16 %v545, %v544
      %v575 = vpack.c.b16 %v547, %v546
      %v576 = vpack.c.b16 %v549, %v548
      %v577 = vpack.c.b16 %v551, %v550
      %v578 = vpack.c.b16 %v553, %v552
      %v579 = vpack.c.b16 %v555, %v554
      %v580 = vpack.c.b16 %v557, %v556
      %v581 = vpack.c.b16 %v559, %v558
      %v582 = vpack.c.b16 %v561, %v560
      %v583 = vpack.c.b16 %v563, %v562
      %v584 = vpack.c.b16 %v565, %v564
      %v585 = vpack.c.b16 %v567, %v566
      %v604 = vunpack.c.l.b16 %v444
      %v605 = vunpack.c.l.b16 %v447
      %v606 = vunpack.c.l.b16 %v450
      %v607 = vunpack.c.l.b16 %v453
      %v608 = vunpack.c.l.b16 %v456
      %v609 = vunpack.c.l.b16 %v459
      %v610 = vunpack.c.l.b16 %v462
      %v611 = vunpack.c.l.b16 %v465
      %v612 = vunpack.c.l.b16 %v468
      %v613 = vunpack.c.l.b16 %v471
      %v614 = vunpack.c.l.b16 %v474
      %v615 = vunpack.c.l.b16 %v477
      %v616 = vunpack.c.l.b16 %v480
      %v617 = vunpack.c.l.b16 %v483
      %v618 = vunpack.c.l.b16 %v486
      %v619 = vunpack.c.l.b16 %v489
      %v620 = vunpack.c.l.b16 %v492
      %v621 = vunpack.c.l.b16 %v495
      %v622 = vpack.c.b16 %v604, %v604
      %v623 = vpack.c.b16 %v605, %v605
      %v624 = vpack.c.b16 %v606, %v606
      %v625 = vpack.c.b16 %v607, %v607
      %v626 = vpack.c.b16 %v608, %v608
      %v627 = vpack.c.b16 %v609, %v609
      %v628 = vpack.c.b16 %v610, %v610
      %v629 = vpack.c.b16 %v611, %v611
      %v630 = vpack.c.b16 %v612, %v612
      %v631 = vpack.c.b16 %v613, %v613
      %v632 = vpack.c.b16 %v614, %v614
      %v633 = vpack.c.b16 %v615, %v615
      %v634 = vpack.c.b16 %v616, %v616
      %v635 = vpack.c.b16 %v617, %v617
      %v636 = vpack.c.b16 %v618, %v618
      %v637 = vpack.c.b16 %v619, %v619
      %v638 = vpack.c.b16 %v620, %v620
      %v639 = vpack.c.b16 %v621, %v621
      %vm640 = vsmask.f32 7424
      %v642 = vshrl.u32 %v568, 16
      %v644 = vshll.u32 %v568, 16
      %v646 = vrot.slane %v644, 1
      %v647 = vor.u32 %v642, %v646
      %v649 = vshll.u32 %v622, 16
      %v651 = vrot.slane %v649, 1
      %v652 = vsel %vm640, %v647, %v651
      %v654 = vshrl.u32 %v569, 16
      %v656 = vshll.u32 %v569, 16
      %v658 = vrot.slane %v656, 1
      %v659 = vor.u32 %v654, %v658
      %v661 = vshll.u32 %v623, 16
      %v663 = vrot.slane %v661, 1
      %v664 = vsel %vm640, %v659, %v663
      %v666 = vshrl.u32 %v570, 16
      %v668 = vshll.u32 %v570, 16
      %v670 = vrot.slane %v668, 1
      %v671 = vor.u32 %v666, %v670
      %v673 = vshll.u32 %v624, 16
      %v675 = vrot.slane %v673, 1
      %v676 = vsel %vm640, %v671, %v675
      %v678 = vshrl.u32 %v571, 16
      %v680 = vshll.u32 %v571, 16
      %v682 = vrot.slane %v680, 1
      %v683 = vor.u32 %v678, %v682
      %v685 = vshll.u32 %v625, 16
      %v687 = vrot.slane %v685, 1
      %v688 = vsel %vm640, %v683, %v687
      %v690 = vshrl.u32 %v572, 16
      %v692 = vshll.u32 %v572, 16
      %v694 = vrot.slane %v692, 1
      %v695 = vor.u32 %v690, %v694
      %v697 = vshll.u32 %v626, 16
      %v699 = vrot.slane %v697, 1
      %v700 = vsel %vm640, %v695, %v699
      %v702 = vshrl.u32 %v573, 16
      %v704 = vshll.u32 %v573, 16
      %v706 = vrot.slane %v704, 1
      %v707 = vor.u32 %v702, %v706
      %v709 = vshll.u32 %v627, 16
      %v711 = vrot.slane %v709, 1
      %v712 = vsel %vm640, %v707, %v711
      %v714 = vshrl.u32 %v574, 16
      %v716 = vshll.u32 %v574, 16
      %v718 = vrot.slane %v716, 1
      %v719 = vor.u32 %v714, %v718
      %v721 = vshll.u32 %v628, 16
      %v723 = vrot.slane %v721, 1
      %v724 = vsel %vm640, %v719, %v723
      %v726 = vshrl.u32 %v575, 16
      %v728 = vshll.u32 %v575, 16
      %v730 = vrot.slane %v728, 1
      %v731 = vor.u32 %v726, %v730
      %v733 = vshll.u32 %v629, 16
      %v735 = vrot.slane %v733, 1
      %v736 = vsel %vm640, %v731, %v735
      %v738 = vshrl.u32 %v576, 16
      %v740 = vshll.u32 %v576, 16
      %v742 = vrot.slane %v740, 1
      %v743 = vor.u32 %v738, %v742
      %v745 = vshll.u32 %v630, 16
      %v747 = vrot.slane %v745, 1
      %v748 = vsel %vm640, %v743, %v747
      %v750 = vshrl.u32 %v577, 16
      %v752 = vshll.u32 %v577, 16
      %v754 = vrot.slane %v752, 1
      %v755 = vor.u32 %v750, %v754
      %v757 = vshll.u32 %v631, 16
      %v759 = vrot.slane %v757, 1
      %v760 = vsel %vm640, %v755, %v759
      %v762 = vshrl.u32 %v578, 16
      %v764 = vshll.u32 %v578, 16
      %v766 = vrot.slane %v764, 1
      %v767 = vor.u32 %v762, %v766
      %v769 = vshll.u32 %v632, 16
      %v771 = vrot.slane %v769, 1
      %v772 = vsel %vm640, %v767, %v771
      %v774 = vshrl.u32 %v579, 16
      %v776 = vshll.u32 %v579, 16
      %v778 = vrot.slane %v776, 1
      %v779 = vor.u32 %v774, %v778
      %v781 = vshll.u32 %v633, 16
      %v783 = vrot.slane %v781, 1
      %v784 = vsel %vm640, %v779, %v783
      %v786 = vshrl.u32 %v580, 16
      %v788 = vshll.u32 %v580, 16
      %v790 = vrot.slane %v788, 1
      %v791 = vor.u32 %v786, %v790
      %v793 = vshll.u32 %v634, 16
      %v795 = vrot.slane %v793, 1
      %v796 = vsel %vm640, %v791, %v795
      %v798 = vshrl.u32 %v581, 16
      %v800 = vshll.u32 %v581, 16
      %v802 = vrot.slane %v800, 1
      %v803 = vor.u32 %v798, %v802
      %v805 = vshll.u32 %v635, 16
      %v807 = vrot.slane %v805, 1
      %v808 = vsel %vm640, %v803, %v807
      %v810 = vshrl.u32 %v582, 16
      %v812 = vshll.u32 %v582, 16
      %v814 = vrot.slane %v812, 1
      %v815 = vor.u32 %v810, %v814
      %v817 = vshll.u32 %v636, 16
      %v819 = vrot.slane %v817, 1
      %v820 = vsel %vm640, %v815, %v819
      %v822 = vshrl.u32 %v583, 16
      %v824 = vshll.u32 %v583, 16
      %v826 = vrot.slane %v824, 1
      %v827 = vor.u32 %v822, %v826
      %v829 = vshll.u32 %v637, 16
      %v831 = vrot.slane %v829, 1
      %v832 = vsel %vm640, %v827, %v831
      %v834 = vshrl.u32 %v584, 16
      %v836 = vshll.u32 %v584, 16
      %v838 = vrot.slane %v836, 1
      %v839 = vor.u32 %v834, %v838
      %v841 = vshll.u32 %v638, 16
      %v843 = vrot.slane %v841, 1
      %v844 = vsel %vm640, %v839, %v843
      %v846 = vshrl.u32 %v585, 16
      %v848 = vshll.u32 %v585, 16
      %v850 = vrot.slane %v848, 1
      %v851 = vor.u32 %v846, %v850
      %v853 = vshll.u32 %v639, 16
      %v855 = vrot.slane %v853, 1
      %v856 = vsel %vm640, %v851, %v855
      %857 = vrot.lane.b32.xlu0 %v652, 4
      %v858 = vpop.permute.xlu0 %857
      %859 = vrot.lane.b32.xlu0 %v664, 4
      %v860 = vpop.permute.xlu0 %859
      %861 = vrot.lane.b32.xlu0 %v676, 4
      %v862 = vpop.permute.xlu0 %861
      %863 = vrot.lane.b32.xlu0 %v688, 4
      %v864 = vpop.permute.xlu0 %863
      %865 = vrot.lane.b32.xlu0 %v700, 4
      %v866 = vpop.permute.xlu0 %865
      %867 = vrot.lane.b32.xlu0 %v712, 4
      %v868 = vpop.permute.xlu0 %867
      %869 = vrot.lane.b32.xlu0 %v724, 4
      %v870 = vpop.permute.xlu0 %869
      %871 = vrot.lane.b32.xlu0 %v736, 4
      %v872 = vpop.permute.xlu0 %871
      %873 = vrot.lane.b32.xlu0 %v748, 4
      %v874 = vpop.permute.xlu0 %873
      %875 = vrot.lane.b32.xlu0 %v760, 4
      %v876 = vpop.permute.xlu0 %875
      %877 = vrot.lane.b32.xlu0 %v772, 4
      %v878 = vpop.permute.xlu0 %877
      %879 = vrot.lane.b32.xlu0 %v784, 4
      %v880 = vpop.permute.xlu0 %879
      %881 = vrot.lane.b32.xlu0 %v796, 4
      %v882 = vpop.permute.xlu0 %881
      %883 = vrot.lane.b32.xlu0 %v808, 4
      %v884 = vpop.permute.xlu0 %883
      %885 = vrot.lane.b32.xlu0 %v820, 4
      %v886 = vpop.permute.xlu0 %885
      %887 = vrot.lane.b32.xlu0 %v832, 4
      %v888 = vpop.permute.xlu0 %887
      %889 = vrot.lane.b32.xlu0 %v844, 4
      %v890 = vpop.permute.xlu0 %889
      %891 = vrot.lane.b32.xlu0 %v856, 4
      %v892 = vpop.permute.xlu0 %891
      %vm893 = vcmask 1046528
      %v894 = vrot.slane %v568, 1
      %v895 = vrot.slane %v622, 1
      %v896 = vsel %vm893, %v894, %v895
      %v897 = vrot.slane %v569, 1
      %v898 = vrot.slane %v623, 1
      %v899 = vsel %vm893, %v897, %v898
      %v900 = vrot.slane %v570, 1
      %v901 = vrot.slane %v624, 1
      %v902 = vsel %vm893, %v900, %v901
      %v903 = vrot.slane %v571, 1
      %v904 = vrot.slane %v625, 1
      %v905 = vsel %vm893, %v903, %v904
      %v906 = vrot.slane %v572, 1
      %v907 = vrot.slane %v626, 1
      %v908 = vsel %vm893, %v906, %v907
      %v909 = vrot.slane %v573, 1
      %v910 = vrot.slane %v627, 1
      %v911 = vsel %vm893, %v909, %v910
      %v912 = vrot.slane %v574, 1
      %v913 = vrot.slane %v628, 1
      %v914 = vsel %vm893, %v912, %v913
      %v915 = vrot.slane %v575, 1
      %v916 = vrot.slane %v629, 1
      %v917 = vsel %vm893, %v915, %v916
      %v918 = vrot.slane %v576, 1
      %v919 = vrot.slane %v630, 1
      %v920 = vsel %vm893, %v918, %v919
      %v921 = vrot.slane %v577, 1
      %v922 = vrot.slane %v631, 1
      %v923 = vsel %vm893, %v921, %v922
      %v924 = vrot.slane %v578, 1
      %v925 = vrot.slane %v632, 1
      %v926 = vsel %vm893, %v924, %v925
      %v927 = vrot.slane %v579, 1
      %v928 = vrot.slane %v633, 1
      %v929 = vsel %vm893, %v927, %v928
      %v930 = vrot.slane %v580, 1
      %v931 = vrot.slane %v634, 1
      %v932 = vsel %vm893, %v930, %v931
      %v933 = vrot.slane %v581, 1
      %v934 = vrot.slane %v635, 1
      %v935 = vsel %vm893, %v933, %v934
      %v936 = vrot.slane %v582, 1
      %v937 = vrot.slane %v636, 1
      %v938 = vsel %vm893, %v936, %v937
      %v939 = vrot.slane %v583, 1
      %v940 = vrot.slane %v637, 1
      %v941 = vsel %vm893, %v939, %v940
      %v942 = vrot.slane %v584, 1
      %v943 = vrot.slane %v638, 1
      %v944 = vsel %vm893, %v942, %v943
      %v945 = vrot.slane %v585, 1
      %v946 = vrot.slane %v639, 1
      %v947 = vsel %vm893, %v945, %v946
      %948 = vrot.lane.b32.xlu0 %v896, 8
      %v949 = vpop.permute.xlu0 %948
      %950 = vrot.lane.b32.xlu0 %v899, 8
      %v951 = vpop.permute.xlu0 %950
      %952 = vrot.lane.b32.xlu0 %v902, 8
      %v953 = vpop.permute.xlu0 %952
      %954 = vrot.lane.b32.xlu0 %v905, 8
      %v955 = vpop.permute.xlu0 %954
      %956 = vrot.lane.b32.xlu0 %v908, 8
      %v957 = vpop.permute.xlu0 %956
      %958 = vrot.lane.b32.xlu0 %v911, 8
      %v959 = vpop.permute.xlu0 %958
      %960 = vrot.lane.b32.xlu0 %v914, 8
      %v961 = vpop.permute.xlu0 %960
      %962 = vrot.lane.b32.xlu0 %v917, 8
      %v963 = vpop.permute.xlu0 %962
      %964 = vrot.lane.b32.xlu0 %v920, 8
      %v965 = vpop.permute.xlu0 %964
      %966 = vrot.lane.b32.xlu0 %v923, 8
      %v967 = vpop.permute.xlu0 %966
      %968 = vrot.lane.b32.xlu0 %v926, 8
      %v969 = vpop.permute.xlu0 %968
      %970 = vrot.lane.b32.xlu0 %v929, 8
      %v971 = vpop.permute.xlu0 %970
      %972 = vrot.lane.b32.xlu0 %v932, 8
      %v973 = vpop.permute.xlu0 %972
      %974 = vrot.lane.b32.xlu0 %v935, 8
      %v975 = vpop.permute.xlu0 %974
      %976 = vrot.lane.b32.xlu0 %v938, 8
      %v977 = vpop.permute.xlu0 %976
      %978 = vrot.lane.b32.xlu0 %v941, 8
      %v979 = vpop.permute.xlu0 %978
      %980 = vrot.lane.b32.xlu0 %v944, 8
      %v981 = vpop.permute.xlu0 %980
      %982 = vrot.lane.b32.xlu0 %v947, 8
      %v983 = vpop.permute.xlu0 %982
      %vm984 = vcmask 31744
      %v986 = vsel %vm984, %v568, %v858
      %v988 = vsel %vm984, %v569, %v860
      %v990 = vsel %vm984, %v570, %v862
      %v992 = vsel %vm984, %v571, %v864
      %v994 = vsel %vm984, %v572, %v866
      %v996 = vsel %vm984, %v573, %v868
      %v998 = vsel %vm984, %v574, %v870
      %v1000 = vsel %vm984, %v575, %v872
      %v1002 = vsel %vm984, %v576, %v874
      %v1004 = vsel %vm984, %v577, %v876
      %v1006 = vsel %vm984, %v578, %v878
      %v1008 = vsel %vm984, %v579, %v880
      %v1010 = vsel %vm984, %v580, %v882
      %v1012 = vsel %vm984, %v581, %v884
      %v1014 = vsel %vm984, %v582, %v886
      %v1016 = vsel %vm984, %v583, %v888
      %v1018 = vsel %vm984, %v584, %v890
      %v1020 = vsel %vm984, %v585, %v892
      %vm1021 = vcmask 64512
      %v1023 = vsel %vm1021, %v986, %v949
      %v1025 = vsel %vm1021, %v988, %v951
      %v1027 = vsel %vm1021, %v990, %v953
      %v1029 = vsel %vm1021, %v992, %v955
      %v1031 = vsel %vm1021, %v994, %v957
      %v1033 = vsel %vm1021, %v996, %v959
      %v1035 = vsel %vm1021, %v998, %v961
      %v1037 = vsel %vm1021, %v1000, %v963
      %v1039 = vsel %vm1021, %v1002, %v965
      %v1041 = vsel %vm1021, %v1004, %v967
      %v1043 = vsel %vm1021, %v1006, %v969
      %v1045 = vsel %vm1021, %v1008, %v971
      %v1047 = vsel %vm1021, %v1010, %v973
      %v1049 = vsel %vm1021, %v1012, %v975
      %v1051 = vsel %vm1021, %v1014, %v977
      %v1053 = vsel %vm1021, %v1016, %v979
      %v1055 = vsel %vm1021, %v1018, %v981
      %v1057 = vsel %vm1021, %v1020, %v983
      %1074 = vrot.lane.b32.xlu0 %v1025, 12
      %v1075 = vpop.permute.xlu0 %1074
      %1076 = vrot.lane.b32.xlu0 %v1027, 12
      %v1077 = vpop.permute.xlu0 %1076
      %1078 = vrot.lane.b32.xlu0 %v1029, 12
      %v1079 = vpop.permute.xlu0 %1078
      %1080 = vrot.lane.b32.xlu0 %v1031, 12
      %v1081 = vpop.permute.xlu0 %1080
      %1082 = vrot.lane.b32.xlu0 %v1033, 12
      %v1083 = vpop.permute.xlu0 %1082
      %1084 = vrot.lane.b32.xlu0 %v1035, 12
      %v1085 = vpop.permute.xlu0 %1084
      %1086 = vrot.lane.b32.xlu0 %v1037, 12
      %v1087 = vpop.permute.xlu0 %1086
      %1088 = vrot.lane.b32.xlu0 %v1039, 12
      %v1089 = vpop.permute.xlu0 %1088
      %1090 = vrot.lane.b32.xlu0 %v1041, 12
      %v1091 = vpop.permute.xlu0 %1090
      %1092 = vrot.lane.b32.xlu0 %v1043, 12
      %v1093 = vpop.permute.xlu0 %1092
      %1094 = vrot.lane.b32.xlu0 %v1045, 12
      %v1095 = vpop.permute.xlu0 %1094
      %1096 = vrot.lane.b32.xlu0 %v1047, 12
      %v1097 = vpop.permute.xlu0 %1096
      %1098 = vrot.lane.b32.xlu0 %v1049, 12
      %v1099 = vpop.permute.xlu0 %1098
      %1100 = vrot.lane.b32.xlu0 %v1051, 12
      %v1101 = vpop.permute.xlu0 %1100
      %1102 = vrot.lane.b32.xlu0 %v1053, 12
      %v1103 = vpop.permute.xlu0 %1102
      %1104 = vrot.lane.b32.xlu0 %v1055, 12
      %v1105 = vpop.permute.xlu0 %1104
      %1107 = vrot.lane.b32.xlu0 %v1027, 24
      %v1108 = vpop.permute.xlu0 %1107
      %1109 = vrot.lane.b32.xlu0 %v1029, 24
      %v1110 = vpop.permute.xlu0 %1109
      %1111 = vrot.lane.b32.xlu0 %v1031, 24
      %v1112 = vpop.permute.xlu0 %1111
      %1113 = vrot.lane.b32.xlu0 %v1033, 24
      %v1114 = vpop.permute.xlu0 %1113
      %1115 = vrot.lane.b32.xlu0 %v1035, 24
      %v1116 = vpop.permute.xlu0 %1115
      %1117 = vrot.lane.b32.xlu0 %v1037, 24
      %v1118 = vpop.permute.xlu0 %1117
      %1119 = vrot.lane.b32.xlu0 %v1039, 24
      %v1120 = vpop.permute.xlu0 %1119
      %1121 = vrot.lane.b32.xlu0 %v1041, 24
      %v1122 = vpop.permute.xlu0 %1121
      %1123 = vrot.lane.b32.xlu0 %v1043, 24
      %v1124 = vpop.permute.xlu0 %1123
      %1125 = vrot.lane.b32.xlu0 %v1045, 24
      %v1126 = vpop.permute.xlu0 %1125
      %1127 = vrot.lane.b32.xlu0 %v1047, 24
      %v1128 = vpop.permute.xlu0 %1127
      %1129 = vrot.lane.b32.xlu0 %v1049, 24
      %v1130 = vpop.permute.xlu0 %1129
      %1131 = vrot.lane.b32.xlu0 %v1051, 24
      %v1132 = vpop.permute.xlu0 %1131
      %1133 = vrot.lane.b32.xlu0 %v1053, 24
      %v1134 = vpop.permute.xlu0 %1133
      %1135 = vrot.lane.b32.xlu0 %v1055, 24
      %v1136 = vpop.permute.xlu0 %1135
      %1137 = vrot.lane.b32.xlu0 %v1057, 24
      %v1138 = vpop.permute.xlu0 %1137
      %vm1139 = vcmask 97280
      %v1141 = vsel %vm1139, %v1023, %v1075
      %v1143 = vsel %vm1139, %v1025, %v1077
      %v1145 = vsel %vm1139, %v1027, %v1079
      %v1147 = vsel %vm1139, %v1029, %v1081
      %v1149 = vsel %vm1139, %v1031, %v1083
      %v1151 = vsel %vm1139, %v1033, %v1085
      %v1153 = vsel %vm1139, %v1035, %v1087
      %v1155 = vsel %vm1139, %v1037, %v1089
      %v1157 = vsel %vm1139, %v1039, %v1091
      %v1159 = vsel %vm1139, %v1041, %v1093
      %v1161 = vsel %vm1139, %v1043, %v1095
      %v1163 = vsel %vm1139, %v1045, %v1097
      %v1165 = vsel %vm1139, %v1047, %v1099
      %v1167 = vsel %vm1139, %v1049, %v1101
      %v1169 = vsel %vm1139, %v1051, %v1103
      %v1171 = vsel %vm1139, %v1053, %v1105
      %vm1172 = vcmask 195584
      %v1174 = vsel %vm1172, %v1141, %v1108
      %v1176 = vsel %vm1172, %v1143, %v1110
      %v1178 = vsel %vm1172, %v1145, %v1112
      %v1180 = vsel %vm1172, %v1147, %v1114
      %v1182 = vsel %vm1172, %v1149, %v1116
      %v1184 = vsel %vm1172, %v1151, %v1118
      %v1186 = vsel %vm1172, %v1153, %v1120
      %v1188 = vsel %vm1172, %v1155, %v1122
      %v1190 = vsel %vm1172, %v1157, %v1124
      %v1192 = vsel %vm1172, %v1159, %v1126
      %v1194 = vsel %vm1172, %v1161, %v1128
      %v1196 = vsel %vm1172, %v1163, %v1130
      %v1198 = vsel %vm1172, %v1165, %v1132
      %v1200 = vsel %vm1172, %v1167, %v1134
      %v1202 = vsel %vm1172, %v1169, %v1136
      %v1204 = vsel %vm1172, %v1171, %v1138
      %v1205 = vld [vmem:[%s3] sm:$0xf]
      %v1206 = vld [vmem:[%s3 + $0x4] sm:$0xf]
      %v1207 = vld [vmem:[%s3 + $0x8] sm:$0xf]
      %v1208 = vld [vmem:[%s3 + $0xc] sm:$0xf]
      %v1209 = vld [vmem:[%s3 + $0x10] sm:$0x3]
      %v1210 = vld [vmem:[%s4] sm:$0x1]
      %v1212 = vlaneseq
      %v1213 = vshrl.u32 %v1212, 7
      %v1214 = vsub.s32 0, %v1213
      %v1215 = vrot.slane %v1210, %v1214
      %v1222 = vunpack.c.l.b16 %v1205
      %v1223 = vunpack.c.l.b16 %v1206
      %v1224 = vunpack.c.l.b16 %v1207
      %v1225 = vunpack.c.l.b16 %v1208
      %v1226 = vunpack.c.l.b16 %v1209
      %v1227 = vpack.c.b16 %v1223, %v1222
      %v1228 = vpack.c.b16 %v1225, %v1224
      %v1229 = vpack.c.b16 %v1226, %v1226
      %vm1232 = vcmask 293888
      %v1233 = vsel %vm1232, %v1174, 0
      %v1235 = vsel %vm1232, %v1176, 0
      %v1237 = vsel %vm1232, %v1178, 0
      %v1239 = vsel %vm1232, %v1180, 0
      %v1241 = vsel %vm1232, %v1182, 0
      %v1243 = vsel %vm1232, %v1184, 0
      %v1245 = vsel %vm1232, %v1186, 0
      %v1247 = vsel %vm1232, %v1188, 0
      %v1249 = vsel %vm1232, %v1190, 0
      %v1251 = vsel %vm1232, %v1192, 0
      %v1253 = vsel %vm1232, %v1194, 0
      %v1255 = vsel %vm1232, %v1196, 0
      %v1257 = vsel %vm1232, %v1198, 0
      %v1259 = vsel %vm1232, %v1200, 0
      %v1261 = vsel %vm1232, %v1202, 0
      %v1263 = vsel %vm1232, %v1204, 0
      %vm1265 = vcmask 1041408
      %v1267 = vsel %vm1265, %v1229, 0
      %1269 = vmatprep.subr.bf16.mxu0 0
      %1270 = vmatpush1.bf16.msra.mxu0 0
      %1271 = vmatprep.subr.bf16.mxu0 0
      %1272 = vmatpush1.bf16.msra.mxu0 0
      %1273 = vmatprep.subr.bf16.mxu0 0
      %1274 = vmatpush1.bf16.msra.mxu0 0
      %1275 = vmatprep.subr.bf16.mxu0 0
      %1276 = vmatpush1.bf16.msra.mxu0 0
      %1277 = vmatprep.subr.bf16.mxu0 0
      %1278 = vmatpush1.bf16.msra.mxu0 0
      %1279 = vmatprep.subr.bf16.mxu0 0
      %1280 = vmatpush1.bf16.msra.mxu0 %v1267
      %1281 = vmatprep.subr.bf16.mxu0 0
      %1282 = vmatpush1.bf16.msra.mxu0 %v1228
      %1283 = vmatprep.subr.bf16.mxu0 0
      %1284 = vmatpush1.bf16.msra.mxu0 %v1227
      %1285 = vmatprep.subr.bf16.mxu0 0
      %1286 = vmatpush2.bf16.msra.mxu0 0
      %1287 = vmatprep.subr.bf16.mxu0 0
      %1288 = vmatpush2.bf16.msra.mxu0 0
      %1289 = vmatprep.subr.bf16.mxu0 0
      %1290 = vmatpush2.bf16.msra.mxu0 0
      %1291 = vmatprep.subr.bf16.mxu0 0
      %1292 = vmatpush2.bf16.msra.mxu0 0
      %1293 = vmatprep.subr.bf16.mxu0 0
      %1294 = vmatpush2.bf16.msra.mxu0 0
      %1295 = vmatprep.subr.bf16.mxu0 0
      %1296 = vmatpush2.bf16.msra.mxu0 0
      %1297 = vmatprep.subr.bf16.mxu0 0
      %1298 = vmatpush2.bf16.msra.mxu0 0
      %1299 = vmatprep.subr.bf16.mxu0 0
      %1300 = vmatpush2.bf16.msra.mxu0 0
      %1301 = vmatprep.mubr.bf16.mxu0 0
      %1302 = vmatmul.mubr.bf16.gmra.mxu0 %v1233
      %v1303 = vpop.f32.mrf.mxu0
      %v1304 = vadd.f32 %v1215, %v1303
      %v1305 = vpop.f32.mrf.mxu0
      %v1306 = vpop.f32.mrf.mxu0
      %v1307 = vadd.f32 %v1215, %v1306
      %v1308 = vpop.f32.mrf.mxu0
      %1309 = vmatprep.mubr.bf16.mxu0 0
      %1310 = vmatmul.mubr.bf16.gmra.mxu0 %v1235
      %v1311 = vpop.f32.mrf.mxu0
      %v1312 = vadd.f32 %v1215, %v1311
      %v1313 = vpop.f32.mrf.mxu0
      %v1314 = vpop.f32.mrf.mxu0
      %v1315 = vadd.f32 %v1215, %v1314
      %v1316 = vpop.f32.mrf.mxu0
      %1317 = vmatprep.mubr.bf16.mxu0 0
      %1318 = vmatmul.mubr.bf16.gmra.mxu0 %v1237
      %v1319 = vpop.f32.mrf.mxu0
      %v1320 = vadd.f32 %v1215, %v1319
      %v1321 = vpop.f32.mrf.mxu0
      %v1322 = vpop.f32.mrf.mxu0
      %v1323 = vadd.f32 %v1215, %v1322
      %v1324 = vpop.f32.mrf.mxu0
      %1325 = vmatprep.mubr.bf16.mxu0 0
      %1326 = vmatmul.mubr.bf16.gmra.mxu0 %v1239
      %v1327 = vpop.f32.mrf.mxu0
      %v1328 = vadd.f32 %v1215, %v1327
      %v1329 = vpop.f32.mrf.mxu0
      %v1330 = vpop.f32.mrf.mxu0
      %v1331 = vadd.f32 %v1215, %v1330
      %v1332 = vpop.f32.mrf.mxu0
      %1333 = vmatprep.mubr.bf16.mxu0 0
      %1334 = vmatmul.mubr.bf16.gmra.mxu0 %v1241
      %v1335 = vpop.f32.mrf.mxu0
      %v1336 = vadd.f32 %v1215, %v1335
      %v1337 = vpop.f32.mrf.mxu0
      %v1338 = vpop.f32.mrf.mxu0
      %v1339 = vadd.f32 %v1215, %v1338
      %v1340 = vpop.f32.mrf.mxu0
      %1341 = vmatprep.mubr.bf16.mxu0 0
      %1342 = vmatmul.mubr.bf16.gmra.mxu0 %v1243
      %v1343 = vpop.f32.mrf.mxu0
      %v1344 = vadd.f32 %v1215, %v1343
      %v1345 = vpop.f32.mrf.mxu0
      %v1346 = vpop.f32.mrf.mxu0
      %v1347 = vadd.f32 %v1215, %v1346
      %v1348 = vpop.f32.mrf.mxu0
      %1349 = vmatprep.mubr.bf16.mxu0 0
      %1350 = vmatmul.mubr.bf16.gmra.mxu0 %v1245
      %v1351 = vpop.f32.mrf.mxu0
      %v1352 = vadd.f32 %v1215, %v1351
      %v1353 = vpop.f32.mrf.mxu0
      %v1354 = vpop.f32.mrf.mxu0
      %v1355 = vadd.f32 %v1215, %v1354
      %v1356 = vpop.f32.mrf.mxu0
      %1357 = vmatprep.mubr.bf16.mxu0 0
      %1358 = vmatmul.mubr.bf16.gmra.mxu0 %v1247
      %v1359 = vpop.f32.mrf.mxu0
      %v1360 = vadd.f32 %v1215, %v1359
      %v1361 = vpop.f32.mrf.mxu0
      %v1362 = vpop.f32.mrf.mxu0
      %v1363 = vadd.f32 %v1215, %v1362
      %v1364 = vpop.f32.mrf.mxu0
      %1365 = vmatprep.mubr.bf16.mxu0 0
      %1366 = vmatmul.mubr.bf16.gmra.mxu0 %v1249
      %v1367 = vpop.f32.mrf.mxu0
      %v1368 = vadd.f32 %v1215, %v1367
      %v1369 = vpop.f32.mrf.mxu0
      %v1370 = vpop.f32.mrf.mxu0
      %v1371 = vadd.f32 %v1215, %v1370
      %v1372 = vpop.f32.mrf.mxu0
      %1373 = vmatprep.mubr.bf16.mxu0 0
      %1374 = vmatmul.mubr.bf16.gmra.mxu0 %v1251
      %v1375 = vpop.f32.mrf.mxu0
      %v1376 = vadd.f32 %v1215, %v1375
      %v1377 = vpop.f32.mrf.mxu0
      %v1378 = vpop.f32.mrf.mxu0
      %v1379 = vadd.f32 %v1215, %v1378
      %v1380 = vpop.f32.mrf.mxu0
      %1381 = vmatprep.mubr.bf16.mxu0 0
      %1382 = vmatmul.mubr.bf16.gmra.mxu0 %v1253
      %v1383 = vpop.f32.mrf.mxu0
      %v1384 = vadd.f32 %v1215, %v1383
      %v1385 = vpop.f32.mrf.mxu0
      %v1386 = vpop.f32.mrf.mxu0
      %v1387 = vadd.f32 %v1215, %v1386
      %v1388 = vpop.f32.mrf.mxu0
      %1389 = vmatprep.mubr.bf16.mxu0 0
      %1390 = vmatmul.mubr.bf16.gmra.mxu0 %v1255
      %v1391 = vpop.f32.mrf.mxu0
      %v1392 = vadd.f32 %v1215, %v1391
      %v1393 = vpop.f32.mrf.mxu0
      %v1394 = vpop.f32.mrf.mxu0
      %v1395 = vadd.f32 %v1215, %v1394
      %v1396 = vpop.f32.mrf.mxu0
      %1397 = vmatprep.mubr.bf16.mxu0 0
      %1398 = vmatmul.mubr.bf16.gmra.mxu0 %v1257
      %v1399 = vpop.f32.mrf.mxu0
      %v1400 = vadd.f32 %v1215, %v1399
      %v1401 = vpop.f32.mrf.mxu0
      %v1402 = vpop.f32.mrf.mxu0
      %v1403 = vadd.f32 %v1215, %v1402
      %v1404 = vpop.f32.mrf.mxu0
      %1405 = vmatprep.mubr.bf16.mxu0 0
      %1406 = vmatmul.mubr.bf16.gmra.mxu0 %v1259
      %v1407 = vpop.f32.mrf.mxu0
      %v1408 = vadd.f32 %v1215, %v1407
      %v1409 = vpop.f32.mrf.mxu0
      %v1410 = vpop.f32.mrf.mxu0
      %v1411 = vadd.f32 %v1215, %v1410
      %v1412 = vpop.f32.mrf.mxu0
      %1413 = vmatprep.mubr.bf16.mxu0 0
      %1414 = vmatmul.mubr.bf16.gmra.mxu0 %v1261
      %v1415 = vpop.f32.mrf.mxu0
      %v1416 = vadd.f32 %v1215, %v1415
      %v1417 = vpop.f32.mrf.mxu0
      %v1418 = vpop.f32.mrf.mxu0
      %v1419 = vadd.f32 %v1215, %v1418
      %v1420 = vpop.f32.mrf.mxu0
      %1421 = vmatprep.mubr.bf16.mxu0 0
      %1422 = vmatmul.mubr.bf16.gmra.mxu0 %v1263
      %v1423 = vpop.f32.mrf.mxu0
      %v1424 = vadd.f32 %v1215, %v1423
      %v1425 = vpop.f32.mrf.mxu0
      %v1426 = vpop.f32.mrf.mxu0
      %v1427 = vadd.f32 %v1215, %v1426
      %v1428 = vpop.f32.mrf.mxu0
      %1429 = vdwg.mxu0
      %v1430 = vmax.f32 %v1304, 0.0
      %v1431 = vmax.f32 %v1307, 0.0
      %v1432 = vmax.f32 %v1312, 0.0
      %v1433 = vmax.f32 %v1315, 0.0
      %v1434 = vmax.f32 %v1320, 0.0
      %v1435 = vmax.f32 %v1323, 0.0
      %v1436 = vmax.f32 %v1328, 0.0
      %v1437 = vmax.f32 %v1331, 0.0
      %v1438 = vmax.f32 %v1336, 0.0
      %v1439 = vmax.f32 %v1339, 0.0
      %v1440 = vmax.f32 %v1344, 0.0
      %v1441 = vmax.f32 %v1347, 0.0
      %v1442 = vmax.f32 %v1352, 0.0
      %v1443 = vmax.f32 %v1355, 0.0
      %v1444 = vmax.f32 %v1360, 0.0
      %v1445 = vmax.f32 %v1363, 0.0
      %v1446 = vmax.f32 %v1368, 0.0
      %v1447 = vmax.f32 %v1371, 0.0
      %v1448 = vmax.f32 %v1376, 0.0
      %v1449 = vmax.f32 %v1379, 0.0
      %v1450 = vmax.f32 %v1384, 0.0
      %v1451 = vmax.f32 %v1387, 0.0
      %v1452 = vmax.f32 %v1392, 0.0
      %v1453 = vmax.f32 %v1395, 0.0
      %v1454 = vmax.f32 %v1400, 0.0
      %v1455 = vmax.f32 %v1403, 0.0
      %v1456 = vmax.f32 %v1408, 0.0
      %v1457 = vmax.f32 %v1411, 0.0
      %v1458 = vmax.f32 %v1416, 0.0
      %v1459 = vmax.f32 %v1419, 0.0
      %v1460 = vmax.f32 %v1424, 0.0
      %v1461 = vmax.f32 %v1427, 0.0
      %v1462 = vld [vmem:[#allocation2] sm:$0x1]
      %v1463 = vadd.f32 %v1430, %v1431
      %v1464 = vadd.f32 %v1463, %v1432
      %v1465 = vadd.f32 %v1464, %v1433
      %v1466 = vadd.f32 %v1465, %v1434
      %v1467 = vadd.f32 %v1466, %v1435
      %v1468 = vadd.f32 %v1467, %v1436
      %v1469 = vadd.f32 %v1468, %v1437
      %v1470 = vadd.f32 %v1469, %v1438
      %v1471 = vadd.f32 %v1470, %v1439
      %v1472 = vadd.f32 %v1471, %v1440
      %v1473 = vadd.f32 %v1472, %v1441
      %v1474 = vadd.f32 %v1473, %v1442
      %v1475 = vadd.f32 %v1474, %v1443
      %v1476 = vadd.f32 %v1475, %v1444
      %v1477 = vadd.f32 %v1476, %v1445
      %v1478 = vadd.f32 %v1477, %v1446
      %v1479 = vadd.f32 %v1478, %v1447
      %v1480 = vadd.f32 %v1479, %v1448
      %v1481 = vadd.f32 %v1480, %v1449
      %v1482 = vadd.f32 %v1481, %v1450
      %v1483 = vadd.f32 %v1482, %v1451
      %v1484 = vadd.f32 %v1483, %v1452
      %v1485 = vadd.f32 %v1484, %v1453
      %v1486 = vadd.f32 %v1485, %v1454
      %v1487 = vadd.f32 %v1486, %v1455
      %v1488 = vadd.f32 %v1487, %v1456
      %v1489 = vadd.f32 %v1488, %v1457
      %v1490 = vadd.f32 %v1489, %v1458
      %v1491 = vadd.f32 %v1490, %v1459
      %v1492 = vadd.f32 %v1491, %v1460
      %v1493 = vadd.f32 %v1492, %v1461
      %v1494 = vrot.slane %v1493, 4
      %v1495 = vadd.f32 %v1493, %v1494
      %v1496 = vrot.slane %v1495, 2
      %v1497 = vadd.f32 %v1495, %v1496
      %v1498 = vrot.slane %v1497, 1
      %v1499 = vadd.f32 %v1497, %v1498
      %v1500 = vadd.f32 %v1462, %v1499
      %1501 = vst [vmem:[#allocation2] sm:$0x1] %v1500
      // Predicated region
      $region53: #{fish_classifier_forward.1} parent=47 // pred_check
        %p1502 = pneg %p437
      $region54: #{fish_classifier_forward.1} parent=47 // pred_check_branch
        %1504 = sbr.rel (%p1502) target = $region56
      $region55: #{fish_classifier_forward.1} parent=47 // pred_region
        %v1505 = vld [vmem:[#allocation2] sm:$0x1]
        %v1506 = vmul.f32 %v1505, 0.00390625
        %v1508 = vlaneseq
        %v1509 = vshrl.u32 %v1508, 7
        %v1510 = vsub.s32 0, %v1509
        %v1511 = vrot.slane %v1506, %v1510
        %v1513 = vpack.c.bf16 %v1511, %v1511
        %v1514 = vld [vmem:[%s5] sm:$0xf]
        %v1515 = vld [vmem:[%s5 + $0x4] sm:$0xf]
        %v1516 = vld [vmem:[%s5 + $0x8] sm:$0xf]
        %v1517 = vld [vmem:[%s5 + $0xc] sm:$0xf]
        %v1518 = vld [vmem:[%s5 + $0x10] sm:$0xf]
        %v1519 = vld [vmem:[%s5 + $0x14] sm:$0xf]
        %v1520 = vld [vmem:[%s5 + $0x18] sm:$0xf]
        %v1521 = vld [vmem:[%s5 + $0x1c] sm:$0xf]
        %v1522 = vld [vmem:[%s5 + $0x20] sm:$0xf]
        %v1523 = vld [vmem:[%s5 + $0x24] sm:$0xf]
        %v1524 = vld [vmem:[%s5 + $0x28] sm:$0xf]
        %v1525 = vld [vmem:[%s5 + $0x2c] sm:$0xf]
        %v1526 = vld [vmem:[%s5 + $0x30] sm:$0xf]
        %v1527 = vld [vmem:[%s5 + $0x34] sm:$0xf]
        %v1528 = vld [vmem:[%s5 + $0x38] sm:$0xf]
        %v1529 = vld [vmem:[%s5 + $0x3c] sm:$0xf]
        %v1530 = vld [vmem:[%s6] sm:$0x1]
        %v1532 = vlaneseq
        %v1533 = vshrl.u32 %v1532, 7
        %v1534 = vsub.s32 0, %v1533
        %v1535 = vrot.slane %v1530, %v1534
        %v1553 = vunpack.c.l.b16 %v1514
        %v1554 = vunpack.c.l.b16 %v1515
        %v1555 = vunpack.c.l.b16 %v1516
        %v1556 = vunpack.c.l.b16 %v1517
        %v1557 = vunpack.c.l.b16 %v1518
        %v1558 = vunpack.c.l.b16 %v1519
        %v1559 = vunpack.c.l.b16 %v1520
        %v1560 = vunpack.c.l.b16 %v1521
        %v1561 = vunpack.c.l.b16 %v1522
        %v1562 = vunpack.c.l.b16 %v1523
        %v1563 = vunpack.c.l.b16 %v1524
        %v1564 = vunpack.c.l.b16 %v1525
        %v1565 = vunpack.c.l.b16 %v1526
        %v1566 = vunpack.c.l.b16 %v1527
        %v1567 = vunpack.c.l.b16 %v1528
        %v1568 = vunpack.c.l.b16 %v1529
        %v1569 = vpack.c.b16 %v1554, %v1553
        %v1570 = vpack.c.b16 %v1556, %v1555
        %v1571 = vpack.c.b16 %v1558, %v1557
        %v1572 = vpack.c.b16 %v1560, %v1559
        %v1573 = vpack.c.b16 %v1562, %v1561
        %v1574 = vpack.c.b16 %v1564, %v1563
        %v1575 = vpack.c.b16 %v1566, %v1565
        %v1576 = vpack.c.b16 %v1568, %v1567
        %1585 = vmatprep.subr.bf16.mxu0 0
        %1586 = vmatpush1.bf16.msra.mxu0 %v1576
        %1587 = vmatprep.subr.bf16.mxu0 0
        %1588 = vmatpush1.bf16.msra.mxu0 %v1575
        %1589 = vmatprep.subr.bf16.mxu0 0
        %1590 = vmatpush1.bf16.msra.mxu0 %v1574
        %1591 = vmatprep.subr.bf16.mxu0 0
        %1592 = vmatpush1.bf16.msra.mxu0 %v1573
        %1593 = vmatprep.subr.bf16.mxu0 0
        %1594 = vmatpush1.bf16.msra.mxu0 %v1572
        %1595 = vmatprep.subr.bf16.mxu0 0
        %1596 = vmatpush1.bf16.msra.mxu0 %v1571
        %1597 = vmatprep.subr.bf16.mxu0 0
        %1598 = vmatpush1.bf16.msra.mxu0 %v1570
        %1599 = vmatprep.subr.bf16.mxu0 0
        %1600 = vmatpush1.bf16.msra.mxu0 %v1569
        %1601 = vmatprep.subr.bf16.mxu0 0
        %1602 = vmatpush2.bf16.msra.mxu0 0
        %1603 = vmatprep.subr.bf16.mxu0 0
        %1604 = vmatpush2.bf16.msra.mxu0 0
        %1605 = vmatprep.subr.bf16.mxu0 0
        %1606 = vmatpush2.bf16.msra.mxu0 0
        %1607 = vmatprep.subr.bf16.mxu0 0
        %1608 = vmatpush2.bf16.msra.mxu0 0
        %1609 = vmatprep.subr.bf16.mxu0 0
        %1610 = vmatpush2.bf16.msra.mxu0 0
        %1611 = vmatprep.subr.bf16.mxu0 0
        %1612 = vmatpush2.bf16.msra.mxu0 0
        %1613 = vmatprep.subr.bf16.mxu0 0
        %1614 = vmatpush2.bf16.msra.mxu0 0
        %1615 = vmatprep.subr.bf16.mxu0 0
        %1616 = vmatpush2.bf16.msra.mxu0 0
        %1617 = vmatprep.mubr.bf16.mxu0 0
        %1618 = vmatmul.mubr.bf16.gmra.mxu0 %v1513
        %v1619 = vpop.f32.mrf.mxu0
        %v1620 = vadd.f32 %v1535, %v1619
        %v1621 = vpop.f32.mrf.mxu0
        %v1622 = vpop.f32.mrf.mxu0
        %v1623 = vpop.f32.mrf.mxu0
        %1624 = vdwg.mxu0
        %1625 = vst [vmem:[%s435] sm:$0xff] %v1620
      $region56: #{fish_classifier_forward.1} parent=47 // pred_fallthru
        _
      %p1626 = scmp.lt.s32.totalorder %s22, 1
      %s1627 = scalar_select %p1626, %s22, 1
      %s1628 = smul.addr %s1627, 8
      %s1629 = scalar_lea.vmem %s7, %s1628
      // Predicated region
      $region57: #{fish_classifier_forward.1} parent=47 // pred_check
        %p1630 = pneg %p226
      $region58: #{fish_classifier_forward.1} parent=47 // pred_check_branch
        %1632 = sbr.rel (%p1630) target = $region60
      $region59: #{fish_classifier_forward.1} parent=47 // pred_region
        _
      $region60: #{fish_classifier_forward.1} parent=47 // pred_fallthru
        _
    $region48: #{fish_classifier_forward.1} parent=5 // pred_fallthru
      _
    %p1633 = scmp.le.s32.totalorder 2, %s13
    // Predicated region
    $region61: #{fish_classifier_forward.1} parent=5 // pred_check
      %p1634 = pneg %p1633
    $region62: #{fish_classifier_forward.1} parent=5 // pred_check_branch
      %1636 = sbr.rel (%p1634) target = $region64
    $region63: #{fish_classifier_forward.1} parent=5 // pred_region
      %s1637 = ssub.s32 %s13, 2
      // Predicated region
      $region65: #{fish_classifier_forward.1} parent=63 // pred_check
        %p1638 = pneg %p232
      $region66: #{fish_classifier_forward.1} parent=63 // pred_check_branch
        %1640 = sbr.rel (%p1638) target = $region68
      $region67: #{fish_classifier_forward.1} parent=63 // pred_region
        %p1641 = scmp.lt.s32.totalorder %s24, 1
        %s1642 = scalar_select %p1641, %s24, 1
        %s1643 = smul.addr %s1642, 8
        %s1644 = scalar_lea.vmem %s7, %s1643
      $region68: #{fish_classifier_forward.1} parent=63 // pred_fallthru
        _
    $region64: #{fish_classifier_forward.1} parent=5 // pred_fallthru
      _
  $region6: #{fish_classifier_forward.1} parent=0 // loop_footer
    %s17 = sadd.s32 1, %s13
  $region7: #{fish_classifier_forward.1} parent=0 // loop_footer_branch
    %12 = sbr.rel target = $region3
  $region8: #{fish_classifier_forward.1} parent=0 // loop_exit
    _

</llo_original>
